<compile_context>
chip_gen: v7x
topology: tpu7x:2x2x1
jax: 0.10.0
libtpu: 0.0.40
codegen_flags: <defaults>
</compile_context>

<pallas_src>
import functools

import jax
import jax.numpy as jnp
from jax.experimental import pallas as pl
from jax.experimental.pallas import tpu as pltpu


def _round_up(x, m):
    return ((x + m - 1) // m) * m


def _pick_images_per_step(n):
    # Batch several images per grid step to amortize per-step overhead, while keeping
    # >= 2 grid steps so the "parallel" batch axis can shard across v7x's 2 TensorCores.
    for nb in (8, 4, 2):
        if n % nb == 0 and n // nb >= 2:
            return nb
    return 1


# ----------------------------------------------------------------------------
# Kernel 1: 3x3 conv (stride 1, padding 1) as ONE fused matmul per image
#   - image kept flat in VMEM (channels on sublanes, pixels on lanes)
#   - 9 shifted slices -> K-stacked (9*Cin, H*W) tap matrix in a VMEM scratch
#   - single (Cout, 9*Cin) @ (9*Cin, H*W) MXU dot, f32 accumulation, f32 bias add
# ----------------------------------------------------------------------------
def _make_conv3x3_kernel(H, W, Nb, doff):
    HW = H * W

    def kernel(x_ref, w_ref, b_ref, masks_ref, o_ref, xpad_ref, taps_ref):
        # x_ref    : (Nb, Cin, H*W) f32   -- unpadded image(s), pixels on lanes
        # w_ref    : (Cout, 9*Cin)  bf16  -- flattened filter, tap-major / cin-minor
        # b_ref    : (Cout, 1)      f32
        # masks_ref: (2, H*W)       bf16  -- row 0: w != 0 mask, row 1: w != W-1 mask
        # o_ref    : (Nb, Cout, H*W) f32  -- clean lane-dense output (no garbage cols)
        # xpad_ref : (Cin, Lpad)    bf16 scratch -- flat zero-padded image
        # taps_ref : (9*Cin, H*W)   bf16 scratch -- K-stacked shifted taps
        cin = x_ref.shape[1]

        left_ok = masks_ref[0:1, :]     # zeroes wrap-around contributions of dx == 0 taps
        right_ok = masks_ref[1:2, :]    # zeroes wrap-around contributions of dx == 2 taps

        # Zero the padded scratch once per grid step; halo regions stay zero for all Nb
        # images (the data window is fully overwritten per image).
        xpad_ref[...] = jnp.zeros_like(xpad_ref)

        w = w_ref[...]
        bias = b_ref[...]
        for nb in range(Nb):                                    # static unroll, Nb small
            # in-kernel pad + f32->bf16 cast (no wrapper-side HBM pre-pass); the data
            # window starts at a lane-aligned offset so this store is unmasked.
            xpad_ref[:, doff:doff + HW] = x_ref[nb].astype(jnp.bfloat16)

            # Assemble the (9*Cin, H*W) tap matrix from 9 shifted in-VMEM slices.
            for t in range(9):
                dy, dx = divmod(t, 3)
                s = doff - W - 1 + dy * W + dx                  # flat offset of tap (dy,dx)
                sl = xpad_ref[:, s:s + HW]                      # (Cin, H*W)
                if dx == 0:
                    sl = sl * left_ok
                elif dx == 2:
                    sl = sl * right_ok
                taps_ref[t * cin:(t + 1) * cin, :] = sl

            # Single MXU matmul, K = 9*Cin, f32 accumulation; bias add stays f32.
            acc = jnp.dot(w, taps_ref[...], preferred_element_type=jnp.float32)
            o_ref[nb] = acc + bias

    return kernel


def conv3x3_pallas(x_nchw, weight, bias):
    """3x3 conv, stride 1, padding 1 (PyTorch Conv2d semantics).
    x: (N, Cin, H, W) f32, weight: (Cout, Cin, 3, 3), bias: (Cout,).
    Returns (N, Cout, H*W) f32, lane-dense; reshape to NCHW is free."""
    N, Cin, H, W = x_nchw.shape
    Cout = weight.shape[0]
    HW = H * W
    doff = _round_up(W + 1, 128)                # lane-aligned start of the data window
    Lpad = _round_up(doff + HW + W + 1, 128)    # room for the dy=2,dx=2 tap slice

    xf = x_nchw.reshape(N, Cin, HW)             # free reshape, stays f32 (cast in-kernel)
    # weight[cout, cin, dy, dx] -> (cout, dy, dx, cin) -> (Cout, 9*Cin), tap-major rows.
    wt = jnp.transpose(weight, (0, 2, 3, 1)).reshape(Cout, 9 * Cin).astype(jnp.bfloat16)
    bc = bias.reshape(Cout, 1).astype(jnp.float32)
    # Horizontal-boundary masks (tiny constant; Pallas fetches it once since its block
    # index never changes).
    col = jnp.arange(HW, dtype=jnp.int32) % W
    masks = jnp.stack([(col != 0), (col != W - 1)]).astype(jnp.bfloat16)     # (2, HW)

    Nb = _pick_images_per_step(N)
    grid = (N // Nb,)

    flops = 2 * N * HW * 9 * Cin * Cout
    bytes_accessed = xf.size * 4 + wt.size * 2 + bc.size * 4 + masks.size * 2 \
        + N * Cout * HW * 4

    # TODO(synk): for large H*W, tile rows within an image (halo rows via the same
    # flat-offset trick) and size the tile against per-generation VMEM (v7x: 64 MiB/TC).
    return pl.pallas_call(
        _make_conv3x3_kernel(H, W, Nb, doff),
        out_shape=jax.ShapeDtypeStruct((N, Cout, HW), jnp.float32),
        grid=grid,
        in_specs=[
            pl.BlockSpec((Nb, Cin, HW), lambda n: (n, 0, 0)),
            pl.BlockSpec((Cout, 9 * Cin), lambda n: (0, 0)),
            pl.BlockSpec((Cout, 1), lambda n: (0, 0)),
            pl.BlockSpec((2, HW), lambda n: (0, 0)),
        ],
        out_specs=pl.BlockSpec((Nb, Cout, HW), lambda n: (n, 0, 0)),
        scratch_shapes=[
            pltpu.VMEM((Cin, Lpad), jnp.bfloat16),
            pltpu.VMEM((9 * Cin, HW), jnp.bfloat16),
        ],
        compiler_params=pltpu.CompilerParams(
            dimension_semantics=("parallel",),
            vmem_limit_bytes=32 * 1024 * 1024),     # explicit; bumps v5e's 16 MiB default
        cost_estimate=pl.CostEstimate(flops=flops, transcendentals=0,
                                      bytes_accessed=bytes_accessed),
    )(xf, wt, bc, masks)


# ----------------------------------------------------------------------------
# Kernel 2: pixel-wise cross-entropy on the last frame of each sequence.
# logits layout: (B*T, C, H*W) -- classes on sublanes, pixels on lanes.
# Output: per-batch lane-dense partial sums (B, 1, TP); final reduce/scale in XLA.
# ----------------------------------------------------------------------------
def _ce_last_frame_kernel(logits_ref, labels_ref, o_ref, *, P, TP):
    # logits_ref: (C, TP) f32, labels_ref: (1, TP) int32, o_ref: (1, TP) f32
    p = pl.program_id(1)

    @pl.when(p == 0)
    def _init():
        o_ref[...] = jnp.zeros_like(o_ref)

    logits = logits_ref[...].astype(jnp.float32)
    labels = labels_ref[...]
    C = logits.shape[0]

    lane = jax.lax.broadcasted_iota(jnp.int32, (1, TP), 1)
    valid = (p * TP + lane) < P                    # tail mask for the last pixel tile
    logits = jnp.where(valid, logits, 0.0)         # neutralize out-of-bounds garbage

    cls = jax.lax.broadcasted_iota(jnp.int32, (C, TP), 0)
    onehot = (cls == labels).astype(jnp.float32)
    picked = jnp.sum(logits * onehot, axis=0, keepdims=True)                 # (1, TP)
    m = jnp.max(logits, axis=0, keepdims=True)
    lse = m + jnp.log(jnp.sum(jnp.exp(logits - m), axis=0, keepdims=True))   # (1, TP)
    # TODO(synk): PyTorch ignore_index=-100 / class weights are not reproduced.
    o_ref[...] = o_ref[...] + jnp.where(valid, lse - picked, 0.0)


def cross_entropy_last_frame_pallas(logits_all, labels_b1p, *, T):
    """logits_all: (B*T, C, P) f32 (full model output); labels_b1p: (B, 1, P) int.
    Reads only the last frame of each sequence via the index_map (no wrapper slice).
    Returns scalar mean CE over B*P pixels."""
    N, C, P = logits_all.shape
    B = N // T
    TP = P if P <= 2048 else 2048                  # cap tile; tail handled by masking
    grid_p = pl.cdiv(P, TP)

    partials = pl.pallas_call(
        functools.partial(_ce_last_frame_kernel, P=P, TP=TP),
        out_shape=jax.ShapeDtypeStruct((B, 1, TP), jnp.float32),
        grid=(B, grid_p),
        in_specs=[
            pl.BlockSpec((None, C, TP), lambda b, p: (b * T + (T - 1), 0, p)),
            pl.BlockSpec((None, 1, TP), lambda b, p: (b, 0, p)),
        ],
        out_specs=pl.BlockSpec((None, 1, TP), lambda b, p: (b, 0, 0)),
        compiler_params=pltpu.CompilerParams(
            dimension_semantics=("parallel", "arbitrary")),
    )(logits_all, labels_b1p.astype(jnp.int32))

    return jnp.sum(partials) / float(B * P)


# ----------------------------------------------------------------------------
# ModelWraper.forward equivalent
# ----------------------------------------------------------------------------
def model_wraper_forward(inputs, labels, params, *, T=2):
    """
    inputs: (B*T, Cin, H, W) NCHW, labels: (B, H, W) int class ids.
    Returns (loss[1], outputs (B*T, Cout, H, W), log_dict).
    """
    N, _, H, W = inputs.shape
    B = N // T

    # self.model(inputs)
    out_flat = conv3x3_pallas(inputs, params["conv_w"], params["conv_b"])  # (N, Cout, H*W)
    Cout = out_flat.shape[1]
    outputs = out_flat.reshape(N, Cout, H, W)                              # free reshape

    # unroll_time(outputs, T=2)[:, -1] + self.loss(...): the CE kernel indexes the last
    # frame of each sequence directly from the flat conv output (no slice/copy pass).
    labels_flat = labels.reshape(B, 1, H * W)
    loss = cross_entropy_last_frame_pallas(out_flat, labels_flat, T=T)

    # get_log_dict(): synthetic conv model has no dz_pred / dz_ref / g attributes
    # TODO(synk): populate dz_pred/dz_ref/gates if a gated temporal model is plugged in.
    log_dict = {}

    return jnp.expand_dims(loss, 0), outputs, log_dict


if __name__ == "__main__":
    key = jax.random.PRNGKey(0)
    B, T, Cin, H, W = 2, 2, 4, 16, 16
    num_classes = 8

    k_in, k_w, k_b, k_lbl = jax.random.split(key, 4)
    inputs = jax.random.normal(k_in, (B * T, Cin, H, W), dtype=jnp.float32)
    labels = jax.random.randint(k_lbl, (B, H, W), 0, num_classes, dtype=jnp.int32)

    # deterministic synthetic parameters (Conv2d(Cin, num_classes, 3, padding=1))
    params = {
        "conv_w": jax.random.normal(k_w, (num_classes, Cin, 3, 3), dtype=jnp.float32) * 0.1,
        "conv_b": jax.random.normal(k_b, (num_classes,), dtype=jnp.float32) * 0.01,
    }

    forward = jax.jit(model_wraper_forward, static_argnames=("T",))
    loss, outputs, log_dict = forward(inputs, labels, params, T=T)
    jax.block_until_ready(loss)
    jax.block_until_ready(outputs)

    # ---- sanity checks against pure-JAX references (same bf16 operand rounding) ----
    ref_out = jax.lax.conv_general_dilated(
        inputs.astype(jnp.bfloat16), params["conv_w"].astype(jnp.bfloat16),
        window_strides=(1, 1), padding="SAME",
        dimension_numbers=("NCHW", "OIHW", "NCHW"),
        preferred_element_type=jnp.float32,
    ) + params["conv_b"][None, :, None, None]
    conv_err = float(jnp.max(jnp.abs(outputs - ref_out)))

    out_last = outputs.reshape(B, T, num_classes, H, W)[:, -1]
    logits_ref = jnp.transpose(out_last, (0, 2, 3, 1)).reshape(-1, num_classes)
    logp = jax.nn.log_softmax(logits_ref, axis=-1)
    ref_loss = -jnp.mean(jnp.take_along_axis(logp, labels.reshape(-1, 1), axis=-1))
    loss_err = float(jnp.abs(loss[0] - ref_loss))

    assert loss.shape == (1,)
    assert outputs.shape == (B * T, num_classes, H, W)
    assert isinstance(log_dict, dict)
    assert conv_err < 5e-3, f"conv mismatch: {conv_err}"
    assert loss_err < 1e-3, f"loss mismatch: {loss_err}"
    print("KERNEL_OK")
</pallas_src>

<mosaic_0001>
module attributes {stable_mosaic.version = 11 : i64} {
  func.func @kernel(%arg0: i32, %arg1: memref<2x4x256xf32, #tpu.memory_space<vmem>>, %arg2: memref<8x36xbf16, #tpu.memory_space<vmem>>, %arg3: memref<8x1xf32, #tpu.memory_space<vmem>>, %arg4: memref<2x256xbf16, #tpu.memory_space<vmem>>, %arg5: memref<2x8x256xf32, #tpu.memory_space<vmem>>, %arg6: memref<4x512xbf16, #tpu.memory_space<vmem>>, %arg7: memref<36x256xbf16, #tpu.memory_space<vmem>>) attributes {dimension_semantics = [#tpu.dimension_semantics<parallel>], iteration_bounds = array<i64: 2>, scalar_prefetch = 0 : i64, scratch_operands = 2 : i64, tpu.core_type = #tpu.core_type<tc>, window_params = [{transform_indices = @transform_0, window_bounds = array<i64: 2, 4, 256>}, {pipeline_mode = #tpu.pipeline_mode<synchronous>, transform_indices = @transform_1, window_bounds = array<i64: 8, 36>}, {pipeline_mode = #tpu.pipeline_mode<synchronous>, transform_indices = @transform_2, window_bounds = array<i64: 8, 1>}, {pipeline_mode = #tpu.pipeline_mode<synchronous>, transform_indices = @transform_3, window_bounds = array<i64: 2, 256>}, {transform_indices = @transform_4, window_bounds = array<i64: 2, 8, 256>}]} {
    %c0 = arith.constant 0 : index
    %c0_0 = arith.constant 0 : index
    %0 = vector.load %arg4[%c0, %c0_0] : memref<2x256xbf16, #tpu.memory_space<vmem>>, vector<1x256xbf16>
    %c1 = arith.constant 1 : index
    %c0_1 = arith.constant 0 : index
    %1 = vector.load %arg4[%c1, %c0_1] : memref<2x256xbf16, #tpu.memory_space<vmem>>, vector<1x256xbf16>
    %cst = arith.constant 0.000000e+00 : bf16
    %2 = vector.broadcast %cst : bf16 to vector<4x512xbf16>
    %c0_2 = arith.constant 0 : index
    %c0_3 = arith.constant 0 : index
    %3 = vector.load %arg6[%c0_2, %c0_3] : memref<4x512xbf16, #tpu.memory_space<vmem>>, vector<4x512xbf16>
    tpu.vector_store %arg6[%c0_2, %c0_3], %2 {strides = array<i32>} : memref<4x512xbf16, #tpu.memory_space<vmem>>, vector<4x512xbf16>,
    %c0_4 = arith.constant 0 : index
    %c0_5 = arith.constant 0 : index
    %4 = vector.load %arg2[%c0_4, %c0_5] : memref<8x36xbf16, #tpu.memory_space<vmem>>, vector<8x36xbf16>
    %c0_6 = arith.constant 0 : index
    %c0_7 = arith.constant 0 : index
    %5 = vector.load %arg3[%c0_6, %c0_7] : memref<8x1xf32, #tpu.memory_space<vmem>>, vector<8x1xf32>
    %c0_8 = arith.constant 0 : index
    %c0_9 = arith.constant 0 : index
    %c0_10 = arith.constant 0 : index
    %6 = vector.load %arg1[%c0_8, %c0_9, %c0_10] : memref<2x4x256xf32, #tpu.memory_space<vmem>>, vector<1x4x256xf32>
    %7 = vector.shape_cast %6 : vector<1x4x256xf32> to vector<4x256xf32>
    %8 = arith.truncf %7 : vector<4x256xf32> to vector<4x256xbf16>
    %c0_11 = arith.constant 0 : index
    %c128 = arith.constant 128 : index
    %9 = vector.load %arg6[%c0_11, %c128] : memref<4x512xbf16, #tpu.memory_space<vmem>>, vector<4x256xbf16>
    tpu.vector_store %arg6[%c0_11, %c128], %8 {strides = array<i32>} : memref<4x512xbf16, #tpu.memory_space<vmem>>, vector<4x256xbf16>,
    %c0_12 = arith.constant 0 : index
    %c111 = arith.constant 111 : index
    %10 = vector.load %arg6[%c0_12, %c111] : memref<4x512xbf16, #tpu.memory_space<vmem>>, vector<4x256xbf16>
    %11 = vector.broadcast %0 : vector<1x256xbf16> to vector<4x256xbf16>
    %12 = arith.mulf %10, %11 : vector<4x256xbf16>
    %c0_13 = arith.constant 0 : index
    %c0_14 = arith.constant 0 : index
    %13 = vector.load %arg7[%c0_13, %c0_14] : memref<36x256xbf16, #tpu.memory_space<vmem>>, vector<4x256xbf16>
    tpu.vector_store %arg7[%c0_13, %c0_14], %12 {strides = array<i32>} : memref<36x256xbf16, #tpu.memory_space<vmem>>, vector<4x256xbf16>,
    %c0_15 = arith.constant 0 : index
    %c112 = arith.constant 112 : index
    %14 = vector.load %arg6[%c0_15, %c112] : memref<4x512xbf16, #tpu.memory_space<vmem>>, vector<4x256xbf16>
    %c4 = arith.constant 4 : index
    %c0_16 = arith.constant 0 : index
    %15 = vector.load %arg7[%c4, %c0_16] : memref<36x256xbf16, #tpu.memory_space<vmem>>, vector<4x256xbf16>
    tpu.vector_store %arg7[%c4, %c0_16], %14 {strides = array<i32>} : memref<36x256xbf16, #tpu.memory_space<vmem>>, vector<4x256xbf16>,
    %c0_17 = arith.constant 0 : index
    %c113 = arith.constant 113 : index
    %16 = vector.load %arg6[%c0_17, %c113] : memref<4x512xbf16, #tpu.memory_space<vmem>>, vector<4x256xbf16>
    %17 = vector.broadcast %1 : vector<1x256xbf16> to vector<4x256xbf16>
    %18 = arith.mulf %16, %17 : vector<4x256xbf16>
    %c8 = arith.constant 8 : index
    %c0_18 = arith.constant 0 : index
    %19 = vector.load %arg7[%c8, %c0_18] : memref<36x256xbf16, #tpu.memory_space<vmem>>, vector<4x256xbf16>
    tpu.vector_store %arg7[%c8, %c0_18], %18 {strides = array<i32>} : memref<36x256xbf16, #tpu.memory_space<vmem>>, vector<4x256xbf16>,
    %c0_19 = arith.constant 0 : index
    %c127 = arith.constant 127 : index
    %20 = vector.load %arg6[%c0_19, %c127] : memref<4x512xbf16, #tpu.memory_space<vmem>>, vector<4x256xbf16>
    %21 = vector.broadcast %0 : vector<1x256xbf16> to vector<4x256xbf16>
    %22 = arith.mulf %20, %21 : vector<4x256xbf16>
    %c12 = arith.constant 12 : index
    %c0_20 = arith.constant 0 : index
    %23 = vector.load %arg7[%c12, %c0_20] : memref<36x256xbf16, #tpu.memory_space<vmem>>, vector<4x256xbf16>
    tpu.vector_store %arg7[%c12, %c0_20], %22 {strides = array<i32>} : memref<36x256xbf16, #tpu.memory_space<vmem>>, vector<4x256xbf16>,
    %c0_21 = arith.constant 0 : index
    %c128_22 = arith.constant 128 : index
    %24 = vector.load %arg6[%c0_21, %c128_22] : memref<4x512xbf16, #tpu.memory_space<vmem>>, vector<4x256xbf16>
    %c16 = arith.constant 16 : index
    %c0_23 = arith.constant 0 : index
    %25 = vector.load %arg7[%c16, %c0_23] : memref<36x256xbf16, #tpu.memory_space<vmem>>, vector<4x256xbf16>
    tpu.vector_store %arg7[%c16, %c0_23], %24 {strides = array<i32>} : memref<36x256xbf16, #tpu.memory_space<vmem>>, vector<4x256xbf16>,
    %c0_24 = arith.constant 0 : index
    %c129 = arith.constant 129 : index
    %26 = vector.load %arg6[%c0_24, %c129] : memref<4x512xbf16, #tpu.memory_space<vmem>>, vector<4x256xbf16>
    %27 = vector.broadcast %1 : vector<1x256xbf16> to vector<4x256xbf16>
    %28 = arith.mulf %26, %27 : vector<4x256xbf16>
    %c20 = arith.constant 20 : index
    %c0_25 = arith.constant 0 : index
    %29 = vector.load %arg7[%c20, %c0_25] : memref<36x256xbf16, #tpu.memory_space<vmem>>, vector<4x256xbf16>
    tpu.vector_store %arg7[%c20, %c0_25], %28 {strides = array<i32>} : memref<36x256xbf16, #tpu.memory_space<vmem>>, vector<4x256xbf16>,
    %c0_26 = arith.constant 0 : index
    %c143 = arith.constant 143 : index
    %30 = vector.load %arg6[%c0_26, %c143] : memref<4x512xbf16, #tpu.memory_space<vmem>>, vector<4x256xbf16>
    %31 = vector.broadcast %0 : vector<1x256xbf16> to vector<4x256xbf16>
    %32 = arith.mulf %30, %31 : vector<4x256xbf16>
    %c24 = arith.constant 24 : index
    %c0_27 = arith.constant 0 : index
    %33 = vector.load %arg7[%c24, %c0_27] : memref<36x256xbf16, #tpu.memory_space<vmem>>, vector<4x256xbf16>
    tpu.vector_store %arg7[%c24, %c0_27], %32 {strides = array<i32>} : memref<36x256xbf16, #tpu.memory_space<vmem>>, vector<4x256xbf16>,
    %c0_28 = arith.constant 0 : index
    %c144 = arith.constant 144 : index
    %34 = vector.load %arg6[%c0_28, %c144] : memref<4x512xbf16, #tpu.memory_space<vmem>>, vector<4x256xbf16>
    %c28 = arith.constant 28 : index
    %c0_29 = arith.constant 0 : index
    %35 = vector.load %arg7[%c28, %c0_29] : memref<36x256xbf16, #tpu.memory_space<vmem>>, vector<4x256xbf16>
    tpu.vector_store %arg7[%c28, %c0_29], %34 {strides = array<i32>} : memref<36x256xbf16, #tpu.memory_space<vmem>>, vector<4x256xbf16>,
    %c0_30 = arith.constant 0 : index
    %c145 = arith.constant 145 : index
    %36 = vector.load %arg6[%c0_30, %c145] : memref<4x512xbf16, #tpu.memory_space<vmem>>, vector<4x256xbf16>
    %37 = vector.broadcast %1 : vector<1x256xbf16> to vector<4x256xbf16>
    %38 = arith.mulf %36, %37 : vector<4x256xbf16>
    %c32 = arith.constant 32 : index
    %c0_31 = arith.constant 0 : index
    %39 = vector.load %arg7[%c32, %c0_31] : memref<36x256xbf16, #tpu.memory_space<vmem>>, vector<4x256xbf16>
    tpu.vector_store %arg7[%c32, %c0_31], %38 {strides = array<i32>} : memref<36x256xbf16, #tpu.memory_space<vmem>>, vector<4x256xbf16>,
    %c0_32 = arith.constant 0 : index
    %c0_33 = arith.constant 0 : index
    %40 = vector.load %arg7[%c0_32, %c0_33] : memref<36x256xbf16, #tpu.memory_space<vmem>>, vector<36x256xbf16>
    %cst_34 = arith.constant dense<0.000000e+00> : vector<8x256xf32>
    %41 = tpu.matmul %4, %40, %cst_34 {dimension_numbers = #tpu.dot_dimension_numbers<[1], [0], [0], [1], [0, 0, 1, 1], [], []>} : vector<8x36xbf16>, vector<36x256xbf16>, vector<8x256xf32> -> vector<8x256xf32>
    %42 = vector.broadcast %5 : vector<8x1xf32> to vector<8x256xf32>
    %43 = arith.addf %41, %42 : vector<8x256xf32>
    %c0_35 = arith.constant 0 : index
    %c0_36 = arith.constant 0 : index
    %c0_37 = arith.constant 0 : index
    %44 = vector.load %arg5[%c0_35, %c0_36, %c0_37] : memref<2x8x256xf32, #tpu.memory_space<vmem>>, vector<1x8x256xf32>
    %45 = vector.shape_cast %44 : vector<1x8x256xf32> to vector<8x256xf32>
    %46 = vector.shape_cast %43 : vector<8x256xf32> to vector<1x8x256xf32>
    tpu.vector_store %arg5[%c0_35, %c0_36, %c0_37], %46 {strides = array<i32>} : memref<2x8x256xf32, #tpu.memory_space<vmem>>, vector<1x8x256xf32>,
    %c1_38 = arith.constant 1 : index
    %c0_39 = arith.constant 0 : index
    %c0_40 = arith.constant 0 : index
    %47 = vector.load %arg1[%c1_38, %c0_39, %c0_40] : memref<2x4x256xf32, #tpu.memory_space<vmem>>, vector<1x4x256xf32>
    %48 = vector.shape_cast %47 : vector<1x4x256xf32> to vector<4x256xf32>
    %49 = arith.truncf %48 : vector<4x256xf32> to vector<4x256xbf16>
    %c0_41 = arith.constant 0 : index
    %c128_42 = arith.constant 128 : index
    %50 = vector.load %arg6[%c0_41, %c128_42] : memref<4x512xbf16, #tpu.memory_space<vmem>>, vector<4x256xbf16>
    tpu.vector_store %arg6[%c0_41, %c128_42], %49 {strides = array<i32>} : memref<4x512xbf16, #tpu.memory_space<vmem>>, vector<4x256xbf16>,
    %c0_43 = arith.constant 0 : index
    %c111_44 = arith.constant 111 : index
    %51 = vector.load %arg6[%c0_43, %c111_44] : memref<4x512xbf16, #tpu.memory_space<vmem>>, vector<4x256xbf16>
    %52 = vector.broadcast %0 : vector<1x256xbf16> to vector<4x256xbf16>
    %53 = arith.mulf %51, %52 : vector<4x256xbf16>
    %c0_45 = arith.constant 0 : index
    %c0_46 = arith.constant 0 : index
    %54 = vector.load %arg7[%c0_45, %c0_46] : memref<36x256xbf16, #tpu.memory_space<vmem>>, vector<4x256xbf16>
    tpu.vector_store %arg7[%c0_45, %c0_46], %53 {strides = array<i32>} : memref<36x256xbf16, #tpu.memory_space<vmem>>, vector<4x256xbf16>,
    %c0_47 = arith.constant 0 : index
    %c112_48 = arith.constant 112 : index
    %55 = vector.load %arg6[%c0_47, %c112_48] : memref<4x512xbf16, #tpu.memory_space<vmem>>, vector<4x256xbf16>
    %c4_49 = arith.constant 4 : index
    %c0_50 = arith.constant 0 : index
    %56 = vector.load %arg7[%c4_49, %c0_50] : memref<36x256xbf16, #tpu.memory_space<vmem>>, vector<4x256xbf16>
    tpu.vector_store %arg7[%c4_49, %c0_50], %55 {strides = array<i32>} : memref<36x256xbf16, #tpu.memory_space<vmem>>, vector<4x256xbf16>,
    %c0_51 = arith.constant 0 : index
    %c113_52 = arith.constant 113 : index
    %57 = vector.load %arg6[%c0_51, %c113_52] : memref<4x512xbf16, #tpu.memory_space<vmem>>, vector<4x256xbf16>
    %58 = vector.broadcast %1 : vector<1x256xbf16> to vector<4x256xbf16>
    %59 = arith.mulf %57, %58 : vector<4x256xbf16>
    %c8_53 = arith.constant 8 : index
    %c0_54 = arith.constant 0 : index
    %60 = vector.load %arg7[%c8_53, %c0_54] : memref<36x256xbf16, #tpu.memory_space<vmem>>, vector<4x256xbf16>
    tpu.vector_store %arg7[%c8_53, %c0_54], %59 {strides = array<i32>} : memref<36x256xbf16, #tpu.memory_space<vmem>>, vector<4x256xbf16>,
    %c0_55 = arith.constant 0 : index
    %c127_56 = arith.constant 127 : index
    %61 = vector.load %arg6[%c0_55, %c127_56] : memref<4x512xbf16, #tpu.memory_space<vmem>>, vector<4x256xbf16>
    %62 = vector.broadcast %0 : vector<1x256xbf16> to vector<4x256xbf16>
    %63 = arith.mulf %61, %62 : vector<4x256xbf16>
    %c12_57 = arith.constant 12 : index
    %c0_58 = arith.constant 0 : index
    %64 = vector.load %arg7[%c12_57, %c0_58] : memref<36x256xbf16, #tpu.memory_space<vmem>>, vector<4x256xbf16>
    tpu.vector_store %arg7[%c12_57, %c0_58], %63 {strides = array<i32>} : memref<36x256xbf16, #tpu.memory_space<vmem>>, vector<4x256xbf16>,
    %c0_59 = arith.constant 0 : index
    %c128_60 = arith.constant 128 : index
    %65 = vector.load %arg6[%c0_59, %c128_60] : memref<4x512xbf16, #tpu.memory_space<vmem>>, vector<4x256xbf16>
    %c16_61 = arith.constant 16 : index
    %c0_62 = arith.constant 0 : index
    %66 = vector.load %arg7[%c16_61, %c0_62] : memref<36x256xbf16, #tpu.memory_space<vmem>>, vector<4x256xbf16>
    tpu.vector_store %arg7[%c16_61, %c0_62], %65 {strides = array<i32>} : memref<36x256xbf16, #tpu.memory_space<vmem>>, vector<4x256xbf16>,
    %c0_63 = arith.constant 0 : index
    %c129_64 = arith.constant 129 : index
    %67 = vector.load %arg6[%c0_63, %c129_64] : memref<4x512xbf16, #tpu.memory_space<vmem>>, vector<4x256xbf16>
    %68 = vector.broadcast %1 : vector<1x256xbf16> to vector<4x256xbf16>
    %69 = arith.mulf %67, %68 : vector<4x256xbf16>
    %c20_65 = arith.constant 20 : index
    %c0_66 = arith.constant 0 : index
    %70 = vector.load %arg7[%c20_65, %c0_66] : memref<36x256xbf16, #tpu.memory_space<vmem>>, vector<4x256xbf16>
    tpu.vector_store %arg7[%c20_65, %c0_66], %69 {strides = array<i32>} : memref<36x256xbf16, #tpu.memory_space<vmem>>, vector<4x256xbf16>,
    %c0_67 = arith.constant 0 : index
    %c143_68 = arith.constant 143 : index
    %71 = vector.load %arg6[%c0_67, %c143_68] : memref<4x512xbf16, #tpu.memory_space<vmem>>, vector<4x256xbf16>
    %72 = vector.broadcast %0 : vector<1x256xbf16> to vector<4x256xbf16>
    %73 = arith.mulf %71, %72 : vector<4x256xbf16>
    %c24_69 = arith.constant 24 : index
    %c0_70 = arith.constant 0 : index
    %74 = vector.load %arg7[%c24_69, %c0_70] : memref<36x256xbf16, #tpu.memory_space<vmem>>, vector<4x256xbf16>
    tpu.vector_store %arg7[%c24_69, %c0_70], %73 {strides = array<i32>} : memref<36x256xbf16, #tpu.memory_space<vmem>>, vector<4x256xbf16>,
    %c0_71 = arith.constant 0 : index
    %c144_72 = arith.constant 144 : index
    %75 = vector.load %arg6[%c0_71, %c144_72] : memref<4x512xbf16, #tpu.memory_space<vmem>>, vector<4x256xbf16>
    %c28_73 = arith.constant 28 : index
    %c0_74 = arith.constant 0 : index
    %76 = vector.load %arg7[%c28_73, %c0_74] : memref<36x256xbf16, #tpu.memory_space<vmem>>, vector<4x256xbf16>
    tpu.vector_store %arg7[%c28_73, %c0_74], %75 {strides = array<i32>} : memref<36x256xbf16, #tpu.memory_space<vmem>>, vector<4x256xbf16>,
    %c0_75 = arith.constant 0 : index
    %c145_76 = arith.constant 145 : index
    %77 = vector.load %arg6[%c0_75, %c145_76] : memref<4x512xbf16, #tpu.memory_space<vmem>>, vector<4x256xbf16>
    %78 = vector.broadcast %1 : vector<1x256xbf16> to vector<4x256xbf16>
    %79 = arith.mulf %77, %78 : vector<4x256xbf16>
    %c32_77 = arith.constant 32 : index
    %c0_78 = arith.constant 0 : index
    %80 = vector.load %arg7[%c32_77, %c0_78] : memref<36x256xbf16, #tpu.memory_space<vmem>>, vector<4x256xbf16>
    tpu.vector_store %arg7[%c32_77, %c0_78], %79 {strides = array<i32>} : memref<36x256xbf16, #tpu.memory_space<vmem>>, vector<4x256xbf16>,
    %c0_79 = arith.constant 0 : index
    %c0_80 = arith.constant 0 : index
    %81 = vector.load %arg7[%c0_79, %c0_80] : memref<36x256xbf16, #tpu.memory_space<vmem>>, vector<36x256xbf16>
    %cst_81 = arith.constant dense<0.000000e+00> : vector<8x256xf32>
    %82 = tpu.matmul %4, %81, %cst_81 {dimension_numbers = #tpu.dot_dimension_numbers<[1], [0], [0], [1], [0, 0, 1, 1], [], []>} : vector<8x36xbf16>, vector<36x256xbf16>, vector<8x256xf32> -> vector<8x256xf32>
    %83 = vector.broadcast %5 : vector<8x1xf32> to vector<8x256xf32>
    %84 = arith.addf %82, %83 : vector<8x256xf32>
    %c1_82 = arith.constant 1 : index
    %c0_83 = arith.constant 0 : index
    %c0_84 = arith.constant 0 : index
    %85 = vector.load %arg5[%c1_82, %c0_83, %c0_84] : memref<2x8x256xf32, #tpu.memory_space<vmem>>, vector<1x8x256xf32>
    %86 = vector.shape_cast %85 : vector<1x8x256xf32> to vector<8x256xf32>
    %87 = vector.shape_cast %84 : vector<8x256xf32> to vector<1x8x256xf32>
    tpu.vector_store %arg5[%c1_82, %c0_83, %c0_84], %87 {strides = array<i32>} : memref<2x8x256xf32, #tpu.memory_space<vmem>>, vector<1x8x256xf32>,
    return
  }
  func.func @transform_0(%arg0: i32) -> (i32, i32, i32) {
    %c0_i32 = arith.constant 0 : i32
    %c0_i32_0 = arith.constant 0 : i32
    %c0_i32_1 = arith.constant 0 : i32
    return %arg0, %c0_i32, %c0_i32_0 : i32, i32, i32
  }
  func.func @transform_1(%arg0: i32) -> (i32, i32) {
    %c0_i32 = arith.constant 0 : i32
    %c0_i32_0 = arith.constant 0 : i32
    %c0_i32_1 = arith.constant 0 : i32
    return %c0_i32, %c0_i32_0 : i32, i32
  }
  func.func @transform_2(%arg0: i32) -> (i32, i32) {
    %c0_i32 = arith.constant 0 : i32
    %c0_i32_0 = arith.constant 0 : i32
    %c0_i32_1 = arith.constant 0 : i32
    return %c0_i32, %c0_i32_0 : i32, i32
  }
  func.func @transform_3(%arg0: i32) -> (i32, i32) {
    %c0_i32 = arith.constant 0 : i32
    %c0_i32_0 = arith.constant 0 : i32
    %c0_i32_1 = arith.constant 0 : i32
    return %c0_i32, %c0_i32_0 : i32, i32
  }
  func.func @transform_4(%arg0: i32) -> (i32, i32, i32) {
    %c0_i32 = arith.constant 0 : i32
    %c0_i32_0 = arith.constant 0 : i32
    %c0_i32_1 = arith.constant 0 : i32
    return %arg0, %c0_i32, %c0_i32_0 : i32, i32, i32
  }
}

module attributes {stable_mosaic.version = 11 : i64} {
  func.func @_ce_last_frame_kernel(%arg0: i32, %arg1: i32, %arg2: memref<1x8x256xf32, #tpu.memory_space<vmem>>, %arg3: memref<1x1x256xi32, #tpu.memory_space<vmem>>, %arg4: memref<1x1x256xf32, #tpu.memory_space<vmem>>) attributes {dimension_semantics = [#tpu.dimension_semantics<parallel>, #tpu.dimension_semantics<arbitrary>], iteration_bounds = array<i64: 2, 1>, scalar_prefetch = 0 : i64, scratch_operands = 0 : i64, tpu.core_type = #tpu.core_type<tc>, window_params = [{transform_indices = @transform_0, window_bounds = array<i64: 1, 8, 256>}, {transform_indices = @transform_1, window_bounds = array<i64: 1, 1, 256>}, {transform_indices = @transform_2, window_bounds = array<i64: 1, 1, 256>}]} {
    %c0_i32 = arith.constant 0 : i32
    %0 = arith.cmpi eq, %arg1, %c0_i32 : i32
    %1 = arith.extui %0 : i1 to i32
    %c0_i32_0 = arith.constant 0 : i32
    %2 = arith.cmpi ne, %1, %c0_i32_0 : i32
    scf.if %2 {
      %cst_17 = arith.constant 0.000000e+00 : f32
      %43 = vector.broadcast %cst_17 : f32 to vector<1x256xf32>
      %c0_18 = arith.constant 0 : index
      %c0_19 = arith.constant 0 : index
      %c0_20 = arith.constant 0 : index
      %44 = vector.load %arg4[%c0_18, %c0_19, %c0_20] : memref<1x1x256xf32, #tpu.memory_space<vmem>>, vector<1x1x256xf32>
      %45 = vector.shape_cast %44 : vector<1x1x256xf32> to vector<1x256xf32>
      %46 = vector.shape_cast %43 : vector<1x256xf32> to vector<1x1x256xf32>
      tpu.vector_store %arg4[%c0_18, %c0_19, %c0_20], %46 {strides = array<i32>} : memref<1x1x256xf32, #tpu.memory_space<vmem>>, vector<1x1x256xf32>,
    } else {
    }
    %c0 = arith.constant 0 : index
    %c0_1 = arith.constant 0 : index
    %c0_2 = arith.constant 0 : index
    %3 = vector.load %arg2[%c0, %c0_1, %c0_2] : memref<1x8x256xf32, #tpu.memory_space<vmem>>, vector<1x8x256xf32>
    %4 = vector.shape_cast %3 : vector<1x8x256xf32> to vector<8x256xf32>
    %c0_3 = arith.constant 0 : index
    %c0_4 = arith.constant 0 : index
    %c0_5 = arith.constant 0 : index
    %5 = vector.load %arg3[%c0_3, %c0_4, %c0_5] : memref<1x1x256xi32, #tpu.memory_space<vmem>>, vector<1x1x256xi32>
    %6 = vector.shape_cast %5 : vector<1x1x256xi32> to vector<1x256xi32>
    %7 = tpu.iota {dimensions = array<i32: 1>} : vector<1x256xi32>
    %c256_i32 = arith.constant 256 : i32
    %8 = arith.muli %arg1, %c256_i32 : i32
    %9 = vector.broadcast %8 : i32 to vector<1x256xi32>
    %10 = arith.addi %9, %7 : vector<1x256xi32>
    %c256_i32_6 = arith.constant 256 : i32
    %11 = vector.broadcast %c256_i32_6 : i32 to vector<1x256xi32>
    %12 = arith.cmpi slt, %10, %11 : vector<1x256xi32>
    %cst = arith.constant 0.000000e+00 : f32
    %13 = vector.shape_cast %12 : vector<1x256xi1> to vector<1x256xi1>
    %14 = vector.broadcast %13 : vector<1x256xi1> to vector<8x256xi1>
    %15 = vector.broadcast %cst : f32 to vector<8x256xf32>
    %16 = arith.select %14, %4, %15 : vector<8x256xi1>, vector<8x256xf32>
    %17 = tpu.iota {dimensions = array<i32: 0>} : vector<8x256xi32>
    %18 = vector.broadcast %6 : vector<1x256xi32> to vector<8x256xi32>
    %19 = arith.cmpi eq, %17, %18 : vector<8x256xi32>
    %20 = arith.extui %19 : vector<8x256xi1> to vector<8x256xi32>
    %21 = arith.sitofp %20 : vector<8x256xi32> to vector<8x256xf32>
    %22 = arith.mulf %16, %21 : vector<8x256xf32>
    %cst_7 = arith.constant dense<0.000000e+00> : vector<256xf32>
    %23 = vector.multi_reduction <add>, %22, %cst_7 [0] : vector<8x256xf32> to vector<256xf32>
    %24 = vector.shape_cast %23 : vector<256xf32> to vector<1x256xf32>
    %cst_8 = arith.constant dense<0xFF800000> : vector<256xf32>
    %25 = vector.multi_reduction <maximumf>, %16, %cst_8 [0] : vector<8x256xf32> to vector<256xf32>
    %26 = vector.shape_cast %25 : vector<256xf32> to vector<1x256xf32>
    %27 = vector.broadcast %26 : vector<1x256xf32> to vector<8x256xf32>
    %28 = arith.subf %16, %27 : vector<8x256xf32>
    %29 = math.exp %28 : vector<8x256xf32>
    %cst_9 = arith.constant dense<0.000000e+00> : vector<256xf32>
    %30 = vector.multi_reduction <add>, %29, %cst_9 [0] : vector<8x256xf32> to vector<256xf32>
    %31 = vector.shape_cast %30 : vector<256xf32> to vector<1x256xf32>
    %32 = math.log %31 : vector<1x256xf32>
    %33 = arith.addf %26, %32 : vector<1x256xf32>
    %c0_10 = arith.constant 0 : index
    %c0_11 = arith.constant 0 : index
    %c0_12 = arith.constant 0 : index
    %34 = vector.load %arg4[%c0_10, %c0_11, %c0_12] : memref<1x1x256xf32, #tpu.memory_space<vmem>>, vector<1x1x256xf32>
    %35 = vector.shape_cast %34 : vector<1x1x256xf32> to vector<1x256xf32>
    %36 = arith.subf %33, %24 : vector<1x256xf32>
    %cst_13 = arith.constant 0.000000e+00 : f32
    %37 = vector.broadcast %cst_13 : f32 to vector<1x256xf32>
    %38 = arith.select %12, %36, %37 : vector<1x256xi1>, vector<1x256xf32>
    %39 = arith.addf %35, %38 : vector<1x256xf32>
    %c0_14 = arith.constant 0 : index
    %c0_15 = arith.constant 0 : index
    %c0_16 = arith.constant 0 : index
    %40 = vector.load %arg4[%c0_14, %c0_15, %c0_16] : memref<1x1x256xf32, #tpu.memory_space<vmem>>, vector<1x1x256xf32>
    %41 = vector.shape_cast %40 : vector<1x1x256xf32> to vector<1x256xf32>
    %42 = vector.shape_cast %39 : vector<1x256xf32> to vector<1x1x256xf32>
    tpu.vector_store %arg4[%c0_14, %c0_15, %c0_16], %42 {strides = array<i32>} : memref<1x1x256xf32, #tpu.memory_space<vmem>>, vector<1x1x256xf32>,
    return
  }
  func.func @transform_0(%arg0: i32, %arg1: i32) -> (i32, i32, i32) {
    %c2_i32 = arith.constant 2 : i32
    %0 = arith.muli %arg0, %c2_i32 : i32
    %c1_i32 = arith.constant 1 : i32
    %1 = arith.addi %0, %c1_i32 : i32
    %c0_i32 = arith.constant 0 : i32
    %c0_i32_0 = arith.constant 0 : i32
    return %1, %c0_i32, %arg1 : i32, i32, i32
  }
  func.func @transform_1(%arg0: i32, %arg1: i32) -> (i32, i32, i32) {
    %c0_i32 = arith.constant 0 : i32
    %c0_i32_0 = arith.constant 0 : i32
    return %arg0, %c0_i32, %arg1 : i32, i32, i32
  }
  func.func @transform_2(%arg0: i32, %arg1: i32) -> (i32, i32, i32) {
    %c0_i32 = arith.constant 0 : i32
    %c0_i32_0 = arith.constant 0 : i32
    %c0_i32_1 = arith.constant 0 : i32
    return %arg0, %c0_i32, %c0_i32_0 : i32, i32, i32
  }
}

</mosaic_0001>

<llo_original>
// kernel: model_wraper_forward.3
$region0: #{model_wraper_forward.3}
  #allocation0 [shape = 'u32[]', space=smem, size = 0x4, offset = 0x4, fixed_abs, tag = 'smem constant byte address 0x4 - core index']
  #allocation1 [shape = 'u32[144,128]{1,0:T(1,128)}', space=vmem, size = 0x12000, scoped, tag = 'internal scratch']
  %s0 = inlined_call_operand.vmem [shape: f32[4,8,256], index: 0, kind: input, shape index: {}]
  %s1 = inlined_call_operand.vmem [shape: s32[2,1,256], index: 1, kind: input, shape index: {}]
  %s2 = inlined_call_operand.vmem [shape: f32[2,1,256], index: 2, kind: output, shape index: {}]
  %s3 = sld [smem:[#allocation0]]
  $region45: #{model_wraper_forward.3} parent=0
    _
  %s5 = ssub.s32 1, %s3
  %s6 = scalar_select 0, %s5, %s3
  loop: start=0, step=1, limit=4
  $region2: #{model_wraper_forward.3} parent=0 // loop_pre_header
    _
  $region3: #{model_wraper_forward.3} parent=0 // loop_header
    %s8 = sphi 0, %s12
    %p9 = scmp.ge.s32.totalorder %s8, 4
    %s15 = sphi 0, %s27
    %s16 = sphi 0, %s23
    %s17 = sphi 0, %s15
    %s18 = sphi 0, %s16
    %s19 = sphi 0, %s17
    %s20 = sphi 0, %s18
    %s36 = sphi 0, %s38
    %s39 = sphi 0, %s36
    %s40 = sphi 0, %s39
    %s56 = sphi 0, %s40
    %s64 = sphi 0, %s66
    %s67 = sphi 0, %s64
    %s68 = sphi 0, %s67
    %s84 = sphi 0, %s68
    %s90 = sphi 0, %s92
    %s93 = sphi 0, %s90
    %s94 = sphi 0, %s93
    %s110 = sphi 0, %s94
  $region4: #{model_wraper_forward.3} parent=0 // loop_header_branch
    %11 = sbr.rel (%p9) target = $region8
  $region5: #{model_wraper_forward.3} parent=0 // loop_body
    %s13 = ssub.s32 %s8, 1
    %s14 = ssub.s32 %s8, 2
    %s21 = sadd.s32 1, %s16
    %p22 = scmp.ge.s32.totalorder %s21, 1
    %s23 = scalar_select %p22, 0, %s21
    %s24 = sadd.s32 1, %s15
    %s25 = scalar_select %p22, %s24, %s15
    %p26 = scmp.ge.s32.totalorder %s25, 2
    %s27 = scalar_select %p26, 0, %s25
    %s28 = smul.u32 %s15, 2
    %s29 = sadd.s32 %s28, 1
    %s30 = smul.u32 %s27, 2
    %s31 = sadd.s32 %s30, 1
    %s32 = ssub.s32 %s29, %s31
    %s33 = ssub.s32 %s16, %s23
    %s34 = sor.u32 %s32, %s33
    %p35 = scmp.eq.s32.totalorder %s34, 0
    %s37 = sadd.s32 %s36, 1
    %s38 = scalar_select %p35, %s36, %s37
    %p41 = pneg %p35
    %p42 = scmp.eq.s32.totalorder %s8, 1
    %p43 = por %p41, %p42
    %p44 = scmp.ne.s32.totalorder %s36, %s39
    %p45 = scmp.eq.s32.totalorder %s8, 0
    %p46 = por %p44, %p45
    %p47 = scmp.ne.s32.totalorder %s36, %s39
    %p48 = scmp.eq.s32.totalorder %s13, 1
    %p49 = por %p47, %p48
    %p50 = scmp.ne.s32.totalorder %s39, %s40
    %p51 = scmp.eq.s32.totalorder %s13, 0
    %p52 = por %p50, %p51
    %p53 = scmp.ne.s32.totalorder %s39, %s40
    %p54 = scmp.eq.s32.totalorder %s14, 1
    %p55 = por %p53, %p54
    %p57 = scmp.ne.s32.totalorder %s40, %s56
    %p58 = scmp.eq.s32.totalorder %s14, 0
    %p59 = por %p57, %p58
    %s60 = ssub.s32 %s15, %s27
    %s61 = ssub.s32 %s16, %s23
    %s62 = sor.u32 %s60, %s61
    %p63 = scmp.eq.s32.totalorder %s62, 0
    %s65 = sadd.s32 %s64, 1
    %s66 = scalar_select %p63, %s64, %s65
    %p69 = pneg %p63
    %p70 = scmp.eq.s32.totalorder %s8, 1
    %p71 = por %p69, %p70
    %p72 = scmp.ne.s32.totalorder %s64, %s67
    %p73 = scmp.eq.s32.totalorder %s8, 0
    %p74 = por %p72, %p73
    %p75 = scmp.ne.s32.totalorder %s64, %s67
    %p76 = scmp.eq.s32.totalorder %s13, 1
    %p77 = por %p75, %p76
    %p78 = scmp.ne.s32.totalorder %s67, %s68
    %p79 = scmp.eq.s32.totalorder %s13, 0
    %p80 = por %p78, %p79
    %p81 = scmp.ne.s32.totalorder %s67, %s68
    %p82 = scmp.eq.s32.totalorder %s14, 1
    %p83 = por %p81, %p82
    %p85 = scmp.ne.s32.totalorder %s68, %s84
    %p86 = scmp.eq.s32.totalorder %s14, 0
    %p87 = por %p85, %p86
    %s88 = ssub.s32 %s15, %s27
    %p89 = scmp.eq.s32.totalorder %s88, 0
    %s91 = sadd.s32 %s90, 1
    %s92 = scalar_select %p89, %s90, %s91
    %p95 = pneg %p89
    %p96 = scmp.eq.s32.totalorder %s8, 1
    %p97 = por %p95, %p96
    %p98 = scmp.ne.s32.totalorder %s90, %s93
    %p99 = scmp.eq.s32.totalorder %s8, 0
    %p100 = por %p98, %p99
    %p101 = scmp.ne.s32.totalorder %s90, %s93
    %p102 = scmp.eq.s32.totalorder %s13, 1
    %p103 = por %p101, %p102
    %p104 = scmp.ne.s32.totalorder %s93, %s94
    %p105 = scmp.eq.s32.totalorder %s13, 0
    %p106 = por %p104, %p105
    %p107 = scmp.ne.s32.totalorder %s93, %s94
    %p108 = scmp.eq.s32.totalorder %s14, 1
    %p109 = por %p107, %p108
    %p111 = scmp.ne.s32.totalorder %s94, %s110
    %p112 = scmp.eq.s32.totalorder %s14, 0
    %p113 = por %p111, %p112
    %p114 = scmp.le.s32.totalorder 1, %s8
    %p115 = scmp.lt.s32.totalorder %s8, 3
    %p116 = pnand %p114, %p115
    %p117 = pneg %p116
    // Predicated region
    $region9: #{model_wraper_forward.3} parent=5 // pred_check
      _
    $region10: #{model_wraper_forward.3} parent=5 // pred_check_branch
      %119 = sbr.rel (%p116) target = $region12
    $region11: #{model_wraper_forward.3} parent=5 // pred_region
      %s120 = ssub.s32 %s8, 1
    $region12: #{model_wraper_forward.3} parent=5 // pred_fallthru
      _
    %p121 = scmp.lt.s32.totalorder %s8, 2
    // Predicated region
    $region13: #{model_wraper_forward.3} parent=5 // pred_check
      %p122 = pneg %p121
    $region14: #{model_wraper_forward.3} parent=5 // pred_check_branch
      %124 = sbr.rel (%p122) target = $region16
    $region15: #{model_wraper_forward.3} parent=5 // pred_region
      // Predicated region
      $region17: #{model_wraper_forward.3} parent=15 // pred_check
        %p125 = pneg %p46
      $region18: #{model_wraper_forward.3} parent=15 // pred_check_branch
        %127 = sbr.rel (%p125) target = $region20
      $region19: #{model_wraper_forward.3} parent=15 // pred_region
        %s128 = smul.u32 %s15, 2
        %s129 = sadd.s32 %s128, 1
        %s130 = smul.u32 2, %s16
        %p131 = scmp.lt.s32.totalorder %s129, 3
        %s132 = scalar_select %p131, %s129, 3
        %p133 = scmp.lt.s32.totalorder %s130, 1
        %s134 = scalar_select %p133, %s130, 1
        %s135 = smul.addr %s132, 2
        %s136 = sadd.s32 %s134, %s135
        %s137 = smul.addr %s136, 8
        %s138 = scalar_lea.vmem %s0, %s137
        %s139 = smul.u32 %s15, 2
        %s140 = sadd.s32 %s139, 1
        %s141 = smul.u32 2, %s16
      $region20: #{model_wraper_forward.3} parent=15 // pred_fallthru
        _
      // Predicated region
      $region21: #{model_wraper_forward.3} parent=15 // pred_check
        %p142 = pneg %p74
      $region22: #{model_wraper_forward.3} parent=15 // pred_check_branch
        %144 = sbr.rel (%p142) target = $region24
      $region23: #{model_wraper_forward.3} parent=15 // pred_region
        %s145 = smul.u32 2, %s16
        %p146 = scmp.lt.s32.totalorder %s15, 1
        %s147 = scalar_select %p146, %s15, 1
        %p148 = scmp.lt.s32.totalorder %s145, 1
        %s149 = scalar_select %p148, %s145, 1
        %s150 = smul.addr %s147, 2
        %s151 = sadd.s32 %s149, %s150
        %s152 = scalar_lea.vmem %s1, %s151
        %s153 = smul.u32 2, %s16
      $region24: #{model_wraper_forward.3} parent=15 // pred_fallthru
        _
    $region16: #{model_wraper_forward.3} parent=5 // pred_fallthru
      _
    %p154 = scmp.le.s32.totalorder 1, %s8
    %p155 = scmp.lt.s32.totalorder %s8, 3
    %p156 = pnand %p154, %p155
    %p157 = pneg %p156
    // Predicated region
    $region25: #{model_wraper_forward.3} parent=5 // pred_check
      _
    $region26: #{model_wraper_forward.3} parent=5 // pred_check_branch
      %159 = sbr.rel (%p156) target = $region28
    $region27: #{model_wraper_forward.3} parent=5 // pred_region
      %s160 = ssub.s32 %s8, 1
      %s161 = smul.u32 %s17, 2
      %s162 = sadd.s32 %s161, 1
      %s163 = smul.u32 2, %s18
      %p164 = scmp.lt.s32.totalorder %s162, 3
      %s165 = scalar_select %p164, %s162, 3
      %p166 = scmp.lt.s32.totalorder %s163, 1
      %s167 = scalar_select %p166, %s163, 1
      %s168 = smul.addr %s165, 2
      %s169 = sadd.s32 %s167, %s168
      %s170 = smul.addr %s169, 8
      %s171 = scalar_lea.vmem %s0, %s170
      %p172 = pneg %p52
      %p173 = pneg %p49
      %s174 = smul.u32 2, %s18
      %p175 = scmp.lt.s32.totalorder %s17, 1
      %s176 = scalar_select %p175, %s17, 1
      %p177 = scmp.lt.s32.totalorder %s174, 1
      %s178 = scalar_select %p177, %s174, 1
      %s179 = smul.addr %s176, 2
      %s180 = sadd.s32 %s178, %s179
      %s181 = scalar_lea.vmem %s1, %s180
      %p182 = pneg %p80
      %p183 = pneg %p77
      %p184 = pneg %p106
      %p185 = pneg %p103
      %p186 = scmp.lt.s32.totalorder %s17, 1
      %s187 = scalar_select %p186, %s17, 1
      %s188 = smul.addr %s187, 2
      %s189 = scalar_lea.vmem %s2, %s188
      %s190 = smul.u32 %s17, 2
      %s191 = sadd.s32 %s190, 1
      %s192 = smul.u32 2, %s18
      %p193 = scmp.lt.s32.totalorder %s191, 3
      %s194 = scalar_select %p193, %s191, 3
      %p195 = scmp.lt.s32.totalorder %s192, 1
      %s196 = scalar_select %p195, %s192, 1
      %s197 = smul.addr %s194, 2
      %s198 = sadd.s32 %s196, %s197
      %s199 = smul.addr %s198, 8
      %s200 = scalar_lea.vmem %s0, %s199
      %s201 = smul.u32 %s17, 2
      %s202 = sadd.s32 %s201, 1
      %s203 = smul.u32 2, %s18
      %s204 = smul.u32 2, %s18
      %p205 = scmp.lt.s32.totalorder %s17, 1
      %s206 = scalar_select %p205, %s17, 1
      %p207 = scmp.lt.s32.totalorder %s204, 1
      %s208 = scalar_select %p207, %s204, 1
      %s209 = smul.addr %s206, 2
      %s210 = sadd.s32 %s208, %s209
      %s211 = scalar_lea.vmem %s1, %s210
      %s212 = smul.u32 2, %s18
      %p213 = scmp.lt.s32.totalorder %s17, 1
      %s214 = scalar_select %p213, %s17, 1
      %s215 = smul.addr %s214, 2
      %s216 = scalar_lea.vmem %s2, %s215
      %p217 = scmp.eq.s32.totalorder %s18, 0
      // Predicated region
      $region29: #{model_wraper_forward.3} parent=27 // pred_check
        %p218 = pneg %p217
      $region30: #{model_wraper_forward.3} parent=27 // pred_check_branch
        %220 = sbr.rel (%p218) target = $region32
      $region31: #{model_wraper_forward.3} parent=27 // pred_region
        %v221 = vlaneseq
        %vm222 = vcmp.ge.s32.totalorder %v221, 0
        %vm223 = vcmp.lt.s32.totalorder %v221, 256
        %vm224 = vmand %vm222, %vm223
        %225 = vst.msk [vmem:[%s216] sm:$0x3] %vm224, 0.0
      $region32: #{model_wraper_forward.3} parent=27 // pred_fallthru
        _
      %v226 = vld [vmem:[%s200] sm:$0xff]
      %v227 = vld [vmem:[%s200 + $0x8] sm:$0xff]
      %v228 = vld [vmem:[%s211] sm:$0x3]
      %v229 = vlaneseq
      %v230 = vand.u32 %v229, 127
      %v231 = vadd.s32 %v230, 128
      %s232 = smul.u32 %s18, 256
      %v233 = vstv %s232
      %v234 = vadd.s32 %v233, %v230
      %v235 = vadd.s32 %v233, %v231
      %vm236 = vcmp.lt.s32.totalorder %v234, 256
      %vm237 = vcmp.lt.s32.totalorder %v235, 256
      %v238 = vsel %vm236, 1, 0
      %v239 = vsel %vm237, 1, 0
      %vm240 = vcmp.eq.s32.totalorder %v238, 1
      %vm241 = vcmp.eq.s32.totalorder %v239, 1
      %v242 = vsel %vm240, %v226, 0.0
      %v243 = vsel %vm241, %v227, 0.0
      %v244 = vlaneseq
      %v245 = vshrl.u32 %v244, 7
      %v246 = vlaneseq
      %v247 = vshrl.u32 %v246, 7
      %v248 = vsub.s32 0, %v247
      %v249 = vrot.slane %v228, %v248
      %v250 = vlaneseq
      %v251 = vshrl.u32 %v250, 7
      %v252 = vsub.s32 1, %v251
      %v253 = vrot.slane %v228, %v252
      %vm254 = vcmp.eq.s32.totalorder %v245, %v249
      %vm255 = vcmp.eq.s32.totalorder %v245, %v253
      %v256 = vsel %vm254, 1, 0
      %v257 = vsel %vm255, 1, 0
      %v258 = vcvt.s32.f32 %v256
      %v259 = vcvt.s32.f32 %v257
      %v260 = vmul.f32 %v242, %v258
      %v261 = vmul.f32 %v243, %v259
      %v262 = vrot.slane %v260, 4
      %v263 = vadd.f32 %v260, %v262
      %v264 = vrot.slane %v263, 2
      %v265 = vadd.f32 %v263, %v264
      %v266 = vrot.slane %v265, 1
      %v267 = vadd.f32 %v265, %v266
      %v268 = vrot.slane %v261, 4
      %v269 = vadd.f32 %v261, %v268
      %v270 = vrot.slane %v269, 2
      %v271 = vadd.f32 %v269, %v270
      %v272 = vrot.slane %v271, 1
      %v273 = vadd.f32 %v271, %v272
      %v274 = vrot.slane %v242, 4
      %v275 = vmax.f32 %v242, %v274
      %v276 = vrot.slane %v275, 2
      %v277 = vmax.f32 %v275, %v276
      %v278 = vrot.slane %v277, 1
      %v279 = vmax.f32 %v277, %v278
      %v280 = vrot.slane %v243, 4
      %v281 = vmax.f32 %v243, %v280
      %v282 = vrot.slane %v281, 2
      %v283 = vmax.f32 %v281, %v282
      %v284 = vrot.slane %v283, 1
      %v285 = vmax.f32 %v283, %v284
      %v286 = vsub.f32 %v242, %v279
      %v287 = vsub.f32 %v243, %v285
      %v288 = vmul.f32 %v286, 1.442695
      %v289 = vpow.pop %v288
      %v290 = vmul.f32 %v287, 1.442695
      %v291 = vpow.pop %v290
      %v292 = vrot.slane %v289, 4
      %v293 = vadd.f32 %v289, %v292
      %v294 = vrot.slane %v293, 2
      %v295 = vadd.f32 %v293, %v294
      %v296 = vrot.slane %v295, 1
      %v297 = vadd.f32 %v295, %v296
      %v298 = vrot.slane %v291, 4
      %v299 = vadd.f32 %v291, %v298
      %v300 = vrot.slane %v299, 2
      %v301 = vadd.f32 %v299, %v300
      %v302 = vrot.slane %v301, 1
      %v303 = vadd.f32 %v301, %v302
      %v304 = vlog2.pop %v297
      %v305 = vmul.f32 %v304, 0.6931472
      %v306 = vlog2.pop %v303
      %v307 = vmul.f32 %v306, 0.6931472
      %v308 = vadd.f32 %v279, %v305
      %v309 = vadd.f32 %v285, %v307
      %v310 = vld [vmem:[%s216] sm:$0x3]
      %v311 = vsub.f32 %v308, %v267
      %v312 = vsub.f32 %v309, %v273
      %v313 = vsel %vm236, %v311, 0.0
      %v314 = vsel %vm237, %v312, 0.0
      %v317 = vcombine.low %v313, %v314
      %v319 = vunpack.c.l.s4 1966171168
      %v320 = vunpack.c.0.s8 %v319
      %v321 = vlaneseq
      %v322 = vshrl.u32 %v321, 7
      %v323 = vsub.s32 %v320, %v322
      %v324 = vrot.slane %v317, %v323
      %v326 = vunpack.c.l.s4 1966171168
      %v327 = vunpack.c.0.s8 %v326
      %v328 = vlaneseq
      %v329 = vshrl.u32 %v328, 7
      %v330 = vsub.s32 %v327, %v329
      %v331 = vrot.slane %v324, %v330
      %v333 = vadd.f32 %v310, %v331
      %v334 = vlaneseq
      %vm335 = vcmp.ge.s32.totalorder %v334, 0
      %vm336 = vcmp.lt.s32.totalorder %v334, 256
      %vm337 = vmand %vm335, %vm336
      %338 = vst.msk [vmem:[%s216] sm:$0x3] %vm337, %v333
      %p339 = scmp.lt.s32.totalorder %s17, 1
      %s340 = scalar_select %p339, %s17, 1
      %s341 = smul.addr %s340, 2
      %s342 = scalar_lea.vmem %s2, %s341
      // Predicated region
      $region33: #{model_wraper_forward.3} parent=27 // pred_check
        %p343 = pneg %p103
      $region34: #{model_wraper_forward.3} parent=27 // pred_check_branch
        %345 = sbr.rel (%p343) target = $region36
      $region35: #{model_wraper_forward.3} parent=27 // pred_region
        _
      $region36: #{model_wraper_forward.3} parent=27 // pred_fallthru
        _
    $region28: #{model_wraper_forward.3} parent=5 // pred_fallthru
      _
    %p346 = scmp.le.s32.totalorder 2, %s8
    // Predicated region
    $region37: #{model_wraper_forward.3} parent=5 // pred_check
      %p347 = pneg %p346
    $region38: #{model_wraper_forward.3} parent=5 // pred_check_branch
      %349 = sbr.rel (%p347) target = $region40
    $region39: #{model_wraper_forward.3} parent=5 // pred_region
      %s350 = ssub.s32 %s8, 2
      // Predicated region
      $region41: #{model_wraper_forward.3} parent=39 // pred_check
        %p351 = pneg %p109
      $region42: #{model_wraper_forward.3} parent=39 // pred_check_branch
        %353 = sbr.rel (%p351) target = $region44
      $region43: #{model_wraper_forward.3} parent=39 // pred_region
        %p354 = scmp.lt.s32.totalorder %s19, 1
        %s355 = scalar_select %p354, %s19, 1
        %s356 = smul.addr %s355, 2
        %s357 = scalar_lea.vmem %s2, %s356
      $region44: #{model_wraper_forward.3} parent=39 // pred_fallthru
        _
    $region40: #{model_wraper_forward.3} parent=5 // pred_fallthru
      _
  $region6: #{model_wraper_forward.3} parent=0 // loop_footer
    %s12 = sadd.s32 1, %s8
  $region7: #{model_wraper_forward.3} parent=0 // loop_footer_branch
    %7 = sbr.rel target = $region3
  $region8: #{model_wraper_forward.3} parent=0 // loop_exit
    _

// kernel: model_wraper_forward.2
$region0: #{model_wraper_forward.2}
  #allocation0 [shape = 'u32[]', space=smem, size = 0x4, offset = 0x4, fixed_abs, tag = 'smem constant byte address 0x4 - core index']
  #allocation1 [shape = 'u32[144,128]{1,0:T(1,128)}', space=vmem, size = 0x12000, scoped, tag = 'internal scratch']
  #allocation2 [shape = 'bf16[4,512]{1,0:T(4,128)(2,1)}', space=vmem, size = 0x1000, scoped, tag = 'scratch operand']
  #allocation3 [shape = 'bf16[36,256]{1,0:T(8,128)(2,1)}', space=vmem, size = 0x5000, scoped, tag = 'scratch operand']
  %s0 = inlined_call_operand.vmem [shape: f32[4,4,256], index: 0, kind: input, shape index: {}]
  %s1 = inlined_call_operand.vmem [shape: bf16[8,36], index: 1, kind: input, shape index: {}]
  %s2 = inlined_call_operand.vmem [shape: f32[8,1], index: 2, kind: input, shape index: {}]
  %s3 = inlined_call_operand.vmem [shape: bf16[2,256], index: 3, kind: input, shape index: {}]
  %s4 = inlined_call_operand.vmem [shape: f32[4,8,256], index: 4, kind: output, shape index: {}]
  %s5 = sld [smem:[#allocation0]]
  $region49: #{model_wraper_forward.2} parent=0
    _
  %s7 = ssub.s32 1, %s5
  %s8 = scalar_select 0, %s7, %s5
  loop: start=0, step=1, limit=4
  $region2: #{model_wraper_forward.2} parent=0 // loop_pre_header
    _
  $region3: #{model_wraper_forward.2} parent=0 // loop_header
    %s10 = sphi 0, %s14
    %p11 = scmp.ge.s32.totalorder %s10, 4
    %s20 = sphi 0, %s22
    %s23 = sphi 0, %s20
    %s24 = sphi 0, %s23
    %s40 = sphi 0, %s24
    %s44 = sphi 0, %s44
    %s46 = sphi 0, %s44
    %s47 = sphi 0, %s46
    %s61 = sphi 0, %s47
    %s65 = sphi 0, %s65
    %s67 = sphi 0, %s65
    %s68 = sphi 0, %s67
    %s82 = sphi 0, %s68
    %s86 = sphi 0, %s86
    %s88 = sphi 0, %s86
    %s89 = sphi 0, %s88
    %s103 = sphi 0, %s89
    %s109 = sphi 0, %s111
    %s112 = sphi 0, %s109
    %s113 = sphi 0, %s112
    %s129 = sphi 0, %s113
  $region4: #{model_wraper_forward.2} parent=0 // loop_header_branch
    %13 = sbr.rel (%p11) target = $region8
  $region5: #{model_wraper_forward.2} parent=0 // loop_body
    %s15 = ssub.s32 %s10, 1
    %s16 = ssub.s32 %s10, 2
    %s17 = sadd.s32 %s10, 1
    %s18 = ssub.s32 %s10, %s17
    %p19 = scmp.eq.s32.totalorder %s18, 0
    %s21 = sadd.s32 %s20, 1
    %s22 = scalar_select %p19, %s20, %s21
    %p25 = pneg %p19
    %p26 = scmp.eq.s32.totalorder %s10, 1
    %p27 = por %p25, %p26
    %p28 = scmp.ne.s32.totalorder %s20, %s23
    %p29 = scmp.eq.s32.totalorder %s10, 0
    %p30 = por %p28, %p29
    %p31 = scmp.ne.s32.totalorder %s20, %s23
    %p32 = scmp.eq.s32.totalorder %s15, 1
    %p33 = por %p31, %p32
    %p34 = scmp.ne.s32.totalorder %s23, %s24
    %p35 = scmp.eq.s32.totalorder %s15, 0
    %p36 = por %p34, %p35
    %p37 = scmp.ne.s32.totalorder %s23, %s24
    %p38 = scmp.eq.s32.totalorder %s16, 1
    %p39 = por %p37, %p38
    %p41 = scmp.ne.s32.totalorder %s24, %s40
    %p42 = scmp.eq.s32.totalorder %s16, 0
    %p43 = por %p41, %p42
    %s45 = sadd.s32 %s44, 1
    %p48 = scmp.eq.s32.totalorder %s10, 1
    %p49 = scmp.ne.s32.totalorder %s44, %s46
    %p50 = scmp.eq.s32.totalorder %s10, 0
    %p51 = por %p49, %p50
    %p52 = scmp.ne.s32.totalorder %s44, %s46
    %p53 = scmp.eq.s32.totalorder %s15, 1
    %p54 = por %p52, %p53
    %p55 = scmp.ne.s32.totalorder %s46, %s47
    %p56 = scmp.eq.s32.totalorder %s15, 0
    %p57 = por %p55, %p56
    %p58 = scmp.ne.s32.totalorder %s46, %s47
    %p59 = scmp.eq.s32.totalorder %s16, 1
    %p60 = por %p58, %p59
    %p62 = scmp.ne.s32.totalorder %s47, %s61
    %p63 = scmp.eq.s32.totalorder %s16, 0
    %p64 = por %p62, %p63
    %s66 = sadd.s32 %s65, 1
    %p69 = scmp.eq.s32.totalorder %s10, 1
    %p70 = scmp.ne.s32.totalorder %s65, %s67
    %p71 = scmp.eq.s32.totalorder %s10, 0
    %p72 = por %p70, %p71
    %p73 = scmp.ne.s32.totalorder %s65, %s67
    %p74 = scmp.eq.s32.totalorder %s15, 1
    %p75 = por %p73, %p74
    %p76 = scmp.ne.s32.totalorder %s67, %s68
    %p77 = scmp.eq.s32.totalorder %s15, 0
    %p78 = por %p76, %p77
    %p79 = scmp.ne.s32.totalorder %s67, %s68
    %p80 = scmp.eq.s32.totalorder %s16, 1
    %p81 = por %p79, %p80
    %p83 = scmp.ne.s32.totalorder %s68, %s82
    %p84 = scmp.eq.s32.totalorder %s16, 0
    %p85 = por %p83, %p84
    %s87 = sadd.s32 %s86, 1
    %p90 = scmp.eq.s32.totalorder %s10, 1
    %p91 = scmp.ne.s32.totalorder %s86, %s88
    %p92 = scmp.eq.s32.totalorder %s10, 0
    %p93 = por %p91, %p92
    %p94 = scmp.ne.s32.totalorder %s86, %s88
    %p95 = scmp.eq.s32.totalorder %s15, 1
    %p96 = por %p94, %p95
    %p97 = scmp.ne.s32.totalorder %s88, %s89
    %p98 = scmp.eq.s32.totalorder %s15, 0
    %p99 = por %p97, %p98
    %p100 = scmp.ne.s32.totalorder %s88, %s89
    %p101 = scmp.eq.s32.totalorder %s16, 1
    %p102 = por %p100, %p101
    %p104 = scmp.ne.s32.totalorder %s89, %s103
    %p105 = scmp.eq.s32.totalorder %s16, 0
    %p106 = por %p104, %p105
    %s107 = ssub.s32 %s10, %s17
    %p108 = scmp.eq.s32.totalorder %s107, 0
    %s110 = sadd.s32 %s109, 1
    %s111 = scalar_select %p108, %s109, %s110
    %p114 = pneg %p108
    %p115 = scmp.eq.s32.totalorder %s10, 1
    %p116 = por %p114, %p115
    %p117 = scmp.ne.s32.totalorder %s109, %s112
    %p118 = scmp.eq.s32.totalorder %s10, 0
    %p119 = por %p117, %p118
    %p120 = scmp.ne.s32.totalorder %s109, %s112
    %p121 = scmp.eq.s32.totalorder %s15, 1
    %p122 = por %p120, %p121
    %p123 = scmp.ne.s32.totalorder %s112, %s113
    %p124 = scmp.eq.s32.totalorder %s15, 0
    %p125 = por %p123, %p124
    %p126 = scmp.ne.s32.totalorder %s112, %s113
    %p127 = scmp.eq.s32.totalorder %s16, 1
    %p128 = por %p126, %p127
    %p130 = scmp.ne.s32.totalorder %s113, %s129
    %p131 = scmp.eq.s32.totalorder %s16, 0
    %p132 = por %p130, %p131
    %p133 = scmp.le.s32.totalorder 1, %s10
    %p134 = scmp.lt.s32.totalorder %s10, 3
    %p135 = pnand %p133, %p134
    %p136 = pneg %p135
    // Predicated region
    $region9: #{model_wraper_forward.2} parent=5 // pred_check
      _
    $region10: #{model_wraper_forward.2} parent=5 // pred_check_branch
      %138 = sbr.rel (%p135) target = $region12
    $region11: #{model_wraper_forward.2} parent=5 // pred_region
      %s139 = ssub.s32 %s10, 1
      // Predicated region
      $region13: #{model_wraper_forward.2} parent=11 // pred_check
        %p140 = pneg %p57
      $region14: #{model_wraper_forward.2} parent=11 // pred_check_branch
        %142 = sbr.rel (%p140) target = $region16
      $region15: #{model_wraper_forward.2} parent=11 // pred_region
        _
      $region16: #{model_wraper_forward.2} parent=11 // pred_fallthru
        _
      // Predicated region
      $region17: #{model_wraper_forward.2} parent=11 // pred_check
        %p143 = pneg %p78
      $region18: #{model_wraper_forward.2} parent=11 // pred_check_branch
        %145 = sbr.rel (%p143) target = $region20
      $region19: #{model_wraper_forward.2} parent=11 // pred_region
        _
      $region20: #{model_wraper_forward.2} parent=11 // pred_fallthru
        _
      // Predicated region
      $region21: #{model_wraper_forward.2} parent=11 // pred_check
        %p146 = pneg %p99
      $region22: #{model_wraper_forward.2} parent=11 // pred_check_branch
        %148 = sbr.rel (%p146) target = $region24
      $region23: #{model_wraper_forward.2} parent=11 // pred_region
        _
      $region24: #{model_wraper_forward.2} parent=11 // pred_fallthru
        _
    $region12: #{model_wraper_forward.2} parent=5 // pred_fallthru
      _
    %p149 = scmp.lt.s32.totalorder %s10, 2
    // Predicated region
    $region25: #{model_wraper_forward.2} parent=5 // pred_check
      %p150 = pneg %p149
    $region26: #{model_wraper_forward.2} parent=5 // pred_check_branch
      %152 = sbr.rel (%p150) target = $region28
    $region27: #{model_wraper_forward.2} parent=5 // pred_region
      // Predicated region
      $region29: #{model_wraper_forward.2} parent=27 // pred_check
        %p153 = pneg %p30
      $region30: #{model_wraper_forward.2} parent=27 // pred_check_branch
        %155 = sbr.rel (%p153) target = $region32
      $region31: #{model_wraper_forward.2} parent=27 // pred_region
        %s156 = smul.u32 2, %s10
        %p157 = scmp.lt.s32.totalorder %s156, 3
        %s158 = scalar_select %p157, %s156, 3
        %s159 = smul.addr %s158, 2
        %s160 = smul.addr %s159, 4
        %s161 = scalar_lea.vmem %s0, %s160
        %s162 = smul.u32 2, %s10
      $region32: #{model_wraper_forward.2} parent=27 // pred_fallthru
        _
    $region28: #{model_wraper_forward.2} parent=5 // pred_fallthru
      _
    %p163 = scmp.le.s32.totalorder 1, %s10
    %p164 = scmp.lt.s32.totalorder %s10, 3
    %p165 = pnand %p163, %p164
    %p166 = pneg %p165
    // Predicated region
    $region33: #{model_wraper_forward.2} parent=5 // pred_check
      _
    $region34: #{model_wraper_forward.2} parent=5 // pred_check_branch
      %168 = sbr.rel (%p165) target = $region36
    $region35: #{model_wraper_forward.2} parent=5 // pred_region
      %s169 = ssub.s32 %s10, 1
      %s170 = smul.u32 2, %s15
      %p171 = scmp.lt.s32.totalorder %s170, 3
      %s172 = scalar_select %p171, %s170, 3
      %s173 = smul.addr %s172, 2
      %s174 = smul.addr %s173, 4
      %s175 = scalar_lea.vmem %s0, %s174
      %p176 = pneg %p36
      %p177 = pneg %p33
      %p178 = pneg %p57
      %p179 = pneg %p54
      %p180 = pneg %p78
      %p181 = pneg %p75
      %p182 = pneg %p99
      %p183 = pneg %p96
      %p184 = pneg %p125
      %p185 = pneg %p122
      %s186 = smul.u32 2, %s15
      %p187 = scmp.lt.s32.totalorder %s186, 3
      %s188 = scalar_select %p187, %s186, 3
      %s189 = smul.addr %s188, 2
      %s190 = smul.addr %s189, 8
      %s191 = scalar_lea.vmem %s4, %s190
      %s192 = smul.u32 2, %s15
      %p193 = scmp.lt.s32.totalorder %s192, 3
      %s194 = scalar_select %p193, %s192, 3
      %s195 = smul.addr %s194, 2
      %s196 = smul.addr %s195, 4
      %s197 = scalar_lea.vmem %s0, %s196
      %s198 = smul.u32 2, %s15
      %s199 = smul.u32 2, %s15
      %p200 = scmp.lt.s32.totalorder %s199, 3
      %s201 = scalar_select %p200, %s199, 3
      %s202 = smul.addr %s201, 2
      %s203 = smul.addr %s202, 8
      %s204 = scalar_lea.vmem %s4, %s203
      %s205 = smul.u32 2, %s15
      %v207 = vld [vmem:[%s3] sm:$0x3]
      %208 = vst [vmem:[#allocation2] sm:$0xff] 0
      %v209 = vld [vmem:[%s1] sm:$0xf]
      %v210 = vld [vmem:[%s2] sm:$0xff]
      %v211 = vld [vmem:[%s197] sm:$0xff]
      %v213 = vcombine.high %v211, %v211
      %v215 = vpack.c.bf16 %v211, %v211
      %v216 = vpack.c.bf16 %v213, %v213
      %v219 = vcombine.low %v215, %v216
      %v221 = vunpack.c.l.s4 1983009808
      %v222 = vunpack.c.0.s8 %v221
      %v223 = vlaneseq
      %v224 = vshrl.u32 %v223, 7
      %v225 = vsub.s32 %v222, %v224
      %v226 = vrot.slane %v219, %v225
      %228 = vst [vmem:[#allocation2 + $0x2] sm:$0xf] %v226
      %v229 = vld [vmem:[#allocation2] sm:$0x3f]
      %v232 = vunpack.c.l.s4 1966171168
      %v233 = vunpack.c.0.s8 %v232
      %v234 = vlaneseq
      %v235 = vshrl.u32 %v234, 7
      %v236 = vsub.s32 %v233, %v235
      %v237 = vrot.slane %v207, %v236
      %v238 = vcombine.high %v237, %v237
      %v240 = vunpack.c.l.s4 1966171168
      %v241 = vunpack.c.0.s8 %v240
      %v242 = vlaneseq
      %v243 = vshrl.u32 %v242, 7
      %v244 = vsub.s32 %v241, %v243
      %v245 = vrot.slane %v237, %v244
      %v247 = vunpack.c.l.s4 1966171168
      %v248 = vunpack.c.0.s8 %v247
      %v249 = vlaneseq
      %v250 = vshrl.u32 %v249, 7
      %v251 = vsub.s32 %v248, %v250
      %v252 = vrot.slane %v238, %v251
      %v254 = vpack.i.b16 %v245, %v245
      %v256 = vlaneseq
      %v257 = vshrl.u32 %v256, 7
      %v258 = vsub.s32 0, %v257
      %v259 = vrot.slane %v254, %v258
      %v261 = vpack.i.b16 %v252, %v252
      %v263 = vlaneseq
      %v264 = vshrl.u32 %v263, 7
      %v265 = vsub.s32 0, %v264
      %v266 = vrot.slane %v261, %v265
      %v269 = vcombine.low %v259, %v266
      %v271 = vunpack.c.l.s4 1983009808
      %v272 = vunpack.c.0.s8 %v271
      %v273 = vlaneseq
      %v274 = vshrl.u32 %v273, 7
      %v275 = vsub.s32 %v272, %v274
      %v276 = vrot.slane %v269, %v275
      %277 = vrot.lane.b32.xlu0 %v276, 111
      %v278 = vpop.permute.xlu0 %277
      %v279 = vrot.slane %v278, 6
      %vm280 = vcmask 908288
      %v281 = vsel %vm280, %v279, %v278
      %v283 = vmul.bf16 %v229, %v281
      %v285 = vcombine.high %v283, %v283
      %v287 = vunpack.c.l.s4 1983009808
      %v288 = vunpack.c.0.s8 %v287
      %v289 = vlaneseq
      %v290 = vshrl.u32 %v289, 7
      %v291 = vsub.s32 %v288, %v290
      %v292 = vrot.slane %v283, %v291
      %v294 = vunpack.c.l.s4 1983009808
      %v295 = vunpack.c.0.s8 %v294
      %v296 = vlaneseq
      %v297 = vshrl.u32 %v296, 7
      %v298 = vsub.s32 %v295, %v297
      %v299 = vrot.slane %v285, %v298
      %300 = vrot.lane.b32.xlu0 %v292, 17
      %v301 = vpop.permute.xlu0 %300
      %302 = vrot.lane.b32.xlu0 %v299, 17
      %v303 = vpop.permute.xlu0 %302
      %v304 = vrot.slane %v301, 4
      %v305 = vrot.slane %v303, 4
      %vm306 = vcmask 1043456
      %v307 = vsel %vm306, %v304, %v305
      %vm308 = vcmask 138240
      %v309 = vsel %vm308, %v301, %v307
      %311 = vst [vmem:[#allocation3] sm:$0x33] %v309
      %v312 = vld [vmem:[#allocation2] sm:$0x3f]
      %v314 = vcombine.low %v312, %v312
      %v316 = vunpack.c.l.s4 1983009808
      %v317 = vunpack.c.0.s8 %v316
      %v318 = vlaneseq
      %v319 = vshrl.u32 %v318, 7
      %v320 = vsub.s32 %v317, %v319
      %v321 = vrot.slane %v314, %v320
      %v323 = vunpack.c.l.s4 1983009808
      %v324 = vunpack.c.0.s8 %v323
      %v325 = vlaneseq
      %v326 = vshrl.u32 %v325, 7
      %v327 = vsub.s32 %v324, %v326
      %v328 = vrot.slane %v312, %v327
      %329 = vrot.lane.b32.xlu0 %v321, 16
      %v330 = vpop.permute.xlu0 %329
      %331 = vrot.lane.b32.xlu0 %v328, 16
      %v332 = vpop.permute.xlu0 %331
      %v333 = vrot.slane %v330, 4
      %v334 = vrot.slane %v332, 4
      %v335 = vsel %vm306, %v333, %v334
      %vm336 = vcmask 130048
      %v337 = vsel %vm336, %v330, %v335
      %339 = vst [vmem:[#allocation3] sm:$0xcc] %v337
      %v340 = vld [vmem:[#allocation2] sm:$0x3f]
      %v341 = vshrl.u32 %v245, 16
      %v342 = vpack.i.b16 %v341, %v341
      %v344 = vlaneseq
      %v345 = vshrl.u32 %v344, 7
      %v346 = vsub.s32 0, %v345
      %v347 = vrot.slane %v342, %v346
      %v348 = vshrl.u32 %v252, 16
      %v349 = vpack.i.b16 %v348, %v348
      %v351 = vlaneseq
      %v352 = vshrl.u32 %v351, 7
      %v353 = vsub.s32 0, %v352
      %v354 = vrot.slane %v349, %v353
      %v357 = vcombine.low %v347, %v354
      %v359 = vunpack.c.l.s4 1983009808
      %v360 = vunpack.c.0.s8 %v359
      %v361 = vlaneseq
      %v362 = vshrl.u32 %v361, 7
      %v363 = vsub.s32 %v360, %v362
      %v364 = vrot.slane %v357, %v363
      %365 = vrot.lane.b32.xlu0 %v364, 113
      %v366 = vpop.permute.xlu0 %365
      %v367 = vrot.slane %v366, 6
      %vm368 = vcmask 924672
      %v369 = vsel %vm368, %v367, %v366
      %v371 = vmul.bf16 %v340, %v369
      %v373 = vcombine.high %v371, %v371
      %v375 = vunpack.c.l.s4 1983009808
      %v376 = vunpack.c.0.s8 %v375
      %v377 = vlaneseq
      %v378 = vshrl.u32 %v377, 7
      %v379 = vsub.s32 %v376, %v378
      %v380 = vrot.slane %v371, %v379
      %v382 = vunpack.c.l.s4 1983009808
      %v383 = vunpack.c.0.s8 %v382
      %v384 = vlaneseq
      %v385 = vshrl.u32 %v384, 7
      %v386 = vsub.s32 %v383, %v385
      %v387 = vrot.slane %v373, %v386
      %388 = vrot.lane.b32.xlu0 %v380, 15
      %v389 = vpop.permute.xlu0 %388
      %390 = vrot.lane.b32.xlu0 %v387, 15
      %v391 = vpop.permute.xlu0 %390
      %v392 = vrot.slane %v389, 4
      %v393 = vrot.slane %v391, 4
      %v394 = vsel %vm306, %v392, %v393
      %vm395 = vcmask 121856
      %v396 = vsel %vm395, %v389, %v394
      %398 = vst [vmem:[#allocation3 + $0x8] sm:$0x33] %v396
      %v399 = vld [vmem:[#allocation2] sm:$0x3f]
      %400 = vrot.lane.b32.xlu0 %v276, 127
      %v401 = vpop.permute.xlu0 %400
      %v402 = vrot.slane %v401, 6
      %vm403 = vcmask 1039360
      %v404 = vsel %vm403, %v402, %v401
      %v406 = vmul.bf16 %v399, %v404
      %v408 = vcombine.low %v406, %v406
      %v410 = vunpack.c.l.s4 1983009808
      %v411 = vunpack.c.0.s8 %v410
      %v412 = vlaneseq
      %v413 = vshrl.u32 %v412, 7
      %v414 = vsub.s32 %v411, %v413
      %v415 = vrot.slane %v408, %v414
      %v417 = vunpack.c.l.s4 1983009808
      %v418 = vunpack.c.0.s8 %v417
      %v419 = vlaneseq
      %v420 = vshrl.u32 %v419, 7
      %v421 = vsub.s32 %v418, %v420
      %v422 = vrot.slane %v406, %v421
      %423 = vrot.lane.b32.xlu0 %v415, 1
      %v424 = vpop.permute.xlu0 %423
      %425 = vrot.lane.b32.xlu0 %v422, 1
      %v426 = vpop.permute.xlu0 %425
      %v427 = vrot.slane %v424, 4
      %v428 = vrot.slane %v426, 4
      %v429 = vsel %vm306, %v427, %v428
      %vm430 = vcmask 7168
      %v431 = vsel %vm430, %v424, %v429
      %433 = vst [vmem:[#allocation3 + $0x8] sm:$0xcc] %v431
      %v434 = vld [vmem:[#allocation2 + $0x2] sm:$0xf]
      %v437 = vunpack.c.l.s4 1983009808
      %v438 = vunpack.c.0.s8 %v437
      %v439 = vlaneseq
      %v440 = vshrl.u32 %v439, 7
      %v441 = vsub.s32 %v438, %v440
      %v442 = vrot.slane %v434, %v441
      %444 = vst [vmem:[#allocation3 + $0x10] sm:$0x33] %v442
      %v445 = vld [vmem:[#allocation2 + $0x2] sm:$0x3f]
      %446 = vrot.lane.b32.xlu0 %v364, 1
      %v447 = vpop.permute.xlu0 %446
      %v448 = vrot.slane %v447, 6
      %v449 = vsel %vm430, %v448, %v447
      %v451 = vmul.bf16 %v445, %v449
      %v453 = vcombine.low %v451, %v451
      %v455 = vunpack.c.l.s4 1983009808
      %v456 = vunpack.c.0.s8 %v455
      %v457 = vlaneseq
      %v458 = vshrl.u32 %v457, 7
      %v459 = vsub.s32 %v456, %v458
      %v460 = vrot.slane %v453, %v459
      %v462 = vunpack.c.l.s4 1983009808
      %v463 = vunpack.c.0.s8 %v462
      %v464 = vlaneseq
      %v465 = vshrl.u32 %v464, 7
      %v466 = vsub.s32 %v463, %v465
      %v467 = vrot.slane %v451, %v466
      %468 = vrot.lane.b32.xlu0 %v460, 127
      %v469 = vpop.permute.xlu0 %468
      %470 = vrot.lane.b32.xlu0 %v467, 127
      %v471 = vpop.permute.xlu0 %470
      %v472 = vrot.slane %v469, 4
      %v473 = vrot.slane %v471, 4
      %v474 = vsel %vm306, %v472, %v473
      %v475 = vsel %vm403, %v469, %v474
      %477 = vst [vmem:[#allocation3 + $0x10] sm:$0xcc] %v475
      %v478 = vld [vmem:[#allocation2 + $0x2] sm:$0x3f]
      %479 = vrot.lane.b32.xlu0 %v276, 15
      %v480 = vpop.permute.xlu0 %479
      %v481 = vrot.slane %v480, 6
      %v482 = vsel %vm395, %v481, %v480
      %v484 = vmul.bf16 %v478, %v482
      %v486 = vcombine.high %v484, %v484
      %v488 = vunpack.c.l.s4 1983009808
      %v489 = vunpack.c.0.s8 %v488
      %v490 = vlaneseq
      %v491 = vshrl.u32 %v490, 7
      %v492 = vsub.s32 %v489, %v491
      %v493 = vrot.slane %v484, %v492
      %v495 = vunpack.c.l.s4 1983009808
      %v496 = vunpack.c.0.s8 %v495
      %v497 = vlaneseq
      %v498 = vshrl.u32 %v497, 7
      %v499 = vsub.s32 %v496, %v498
      %v500 = vrot.slane %v486, %v499
      %501 = vrot.lane.b32.xlu0 %v493, 113
      %v502 = vpop.permute.xlu0 %501
      %503 = vrot.lane.b32.xlu0 %v500, 113
      %v504 = vpop.permute.xlu0 %503
      %v505 = vrot.slane %v502, 4
      %v506 = vrot.slane %v504, 4
      %v507 = vsel %vm306, %v505, %v506
      %v508 = vsel %vm368, %v502, %v507
      %510 = vst [vmem:[#allocation3 + $0x18] sm:$0x33] %v508
      %v511 = vld [vmem:[#allocation2 + $0x2] sm:$0x3f]
      %v513 = vcombine.low %v511, %v511
      %v515 = vunpack.c.l.s4 1983009808
      %v516 = vunpack.c.0.s8 %v515
      %v517 = vlaneseq
      %v518 = vshrl.u32 %v517, 7
      %v519 = vsub.s32 %v516, %v518
      %v520 = vrot.slane %v513, %v519
      %v522 = vunpack.c.l.s4 1983009808
      %v523 = vunpack.c.0.s8 %v522
      %v524 = vlaneseq
      %v525 = vshrl.u32 %v524, 7
      %v526 = vsub.s32 %v523, %v525
      %v527 = vrot.slane %v511, %v526
      %528 = vrot.lane.b32.xlu0 %v520, 112
      %v529 = vpop.permute.xlu0 %528
      %530 = vrot.lane.b32.xlu0 %v527, 112
      %v531 = vpop.permute.xlu0 %530
      %v532 = vrot.slane %v529, 4
      %v533 = vrot.slane %v531, 4
      %v534 = vsel %vm306, %v532, %v533
      %vm535 = vcmask 916480
      %v536 = vsel %vm535, %v529, %v534
      %538 = vst [vmem:[#allocation3 + $0x18] sm:$0xcc] %v536
      %v539 = vld [vmem:[#allocation2 + $0x2] sm:$0x3f]
      %540 = vrot.lane.b32.xlu0 %v364, 17
      %v541 = vpop.permute.xlu0 %540
      %v542 = vrot.slane %v541, 6
      %v543 = vsel %vm308, %v542, %v541
      %v545 = vmul.bf16 %v539, %v543
      %v547 = vcombine.high %v545, %v545
      %v549 = vunpack.c.l.s4 1983009808
      %v550 = vunpack.c.0.s8 %v549
      %v551 = vlaneseq
      %v552 = vshrl.u32 %v551, 7
      %v553 = vsub.s32 %v550, %v552
      %v554 = vrot.slane %v545, %v553
      %v556 = vunpack.c.l.s4 1983009808
      %v557 = vunpack.c.0.s8 %v556
      %v558 = vlaneseq
      %v559 = vshrl.u32 %v558, 7
      %v560 = vsub.s32 %v557, %v559
      %v561 = vrot.slane %v547, %v560
      %562 = vrot.lane.b32.xlu0 %v554, 111
      %v563 = vpop.permute.xlu0 %562
      %564 = vrot.lane.b32.xlu0 %v561, 111
      %v565 = vpop.permute.xlu0 %564
      %v566 = vrot.slane %v563, 4
      %v567 = vrot.slane %v565, 4
      %v568 = vsel %vm306, %v566, %v567
      %v569 = vsel %vm280, %v563, %v568
      %571 = vst [vmem:[#allocation3 + $0x20] sm:$0x33] %v569
      %v572 = vld [vmem:[#allocation3] sm:$0xff]
      %v573 = vld [vmem:[#allocation3 + $0x8] sm:$0xff]
      %v574 = vld [vmem:[#allocation3 + $0x10] sm:$0xff]
      %v575 = vld [vmem:[#allocation3 + $0x18] sm:$0xff]
      %v576 = vld [vmem:[#allocation3 + $0x20] sm:$0x33]
      %578 = vset.pattern.permute.xlu0 0
      %579 = vperm.xlu0 %578, %v210
      %v580 = vpop.permute.xlu0 %579
      %v587 = vunpack.c.l.b16 %v572
      %v588 = vunpack.c.h.b16 %v572
      %v589 = vunpack.c.l.b16 %v573
      %v590 = vunpack.c.h.b16 %v573
      %v591 = vunpack.c.l.b16 %v574
      %v592 = vunpack.c.h.b16 %v574
      %v593 = vunpack.c.l.b16 %v575
      %v594 = vunpack.c.h.b16 %v575
      %v595 = vunpack.c.l.b16 %v576
      %v596 = vunpack.c.h.b16 %v576
      %v597 = vpack.c.b16 %v589, %v587
      %v598 = vpack.c.b16 %v590, %v588
      %v599 = vpack.c.b16 %v593, %v591
      %v600 = vpack.c.b16 %v594, %v592
      %v601 = vpack.c.b16 %v595, %v595
      %v602 = vpack.c.b16 %v596, %v596
      %vm607 = vcmask 293888
      %v609 = vsel %vm607, %v209, 0
      %vm611 = vcmask 1041408
      %v613 = vsel %vm611, %v601, 0
      %v616 = vsel %vm611, %v602, 0
      %618 = vmatprep.subr.bf16.mxu0 %v598
      %619 = vmatpush1.bf16.msra.mxu0 %v597
      %620 = vmatprep.subr.bf16.mxu0 %v600
      %621 = vmatpush1.bf16.msra.mxu0 %v599
      %622 = vmatprep.subr.bf16.mxu0 %v616
      %623 = vmatpush1.bf16.msra.mxu0 %v613
      %624 = vmatprep.subr.bf16.mxu0 0
      %625 = vmatpush1.bf16.msra.mxu0 0
      %626 = vmatprep.subr.bf16.mxu0 0
      %627 = vmatpush1.bf16.msra.mxu0 0
      %628 = vmatprep.subr.bf16.mxu0 0
      %629 = vmatpush1.bf16.msra.mxu0 0
      %630 = vmatprep.subr.bf16.mxu0 0
      %631 = vmatpush1.bf16.msra.mxu0 0
      %632 = vmatprep.subr.bf16.mxu0 0
      %633 = vmatpush1.bf16.msra.mxu0 0
      %634 = vmatprep.subr.bf16.mxu0 0
      %635 = vmatpush1.bf16.msra.mxu0 0
      %636 = vmatprep.subr.bf16.mxu0 0
      %637 = vmatpush1.bf16.msra.mxu0 0
      %638 = vmatprep.subr.bf16.mxu0 0
      %639 = vmatpush1.bf16.msra.mxu0 0
      %640 = vmatprep.subr.bf16.mxu0 0
      %641 = vmatpush1.bf16.msra.mxu0 0
      %642 = vmatprep.subr.bf16.mxu0 0
      %643 = vmatpush1.bf16.msra.mxu0 0
      %644 = vmatprep.subr.bf16.mxu0 0
      %645 = vmatpush1.bf16.msra.mxu0 0
      %646 = vmatprep.subr.bf16.mxu0 0
      %647 = vmatpush1.bf16.msra.mxu0 0
      %648 = vmatprep.subr.bf16.mxu0 0
      %649 = vmatpush1.bf16.msra.mxu0 0
      %650 = vmatprep.mubr.bf16.mxu0 0
      %651 = vmatmul.mubr.bf16.gmra.mrb[0].mxu0 %v609
      %v652 = vpop.f32.mrb[0].mxu0
      %v653 = vadd.f32 %v580, %v652
      %v654 = vpop.f32.mrb[0].mxu0
      %v655 = vadd.f32 %v580, %v654
      %v656 = vpop.f32.mrb[0].mxu0
      %v657 = vpop.f32.mrb[0].mxu0
      %658 = vdwg.mxu0
      %659 = vst [vmem:[%s204] sm:$0xff] %v653
      %660 = vst [vmem:[%s204 + $0x8] sm:$0xff] %v655
      %s661 = scalar_lea.vmem %s197, 8
      %v662 = vld [vmem:[%s661] sm:$0xff]
      %v664 = vcombine.high %v662, %v662
      %v666 = vpack.c.bf16 %v662, %v662
      %v667 = vpack.c.bf16 %v664, %v664
      %v670 = vcombine.low %v666, %v667
      %v672 = vunpack.c.l.s4 1983009808
      %v673 = vunpack.c.0.s8 %v672
      %v674 = vlaneseq
      %v675 = vshrl.u32 %v674, 7
      %v676 = vsub.s32 %v673, %v675
      %v677 = vrot.slane %v670, %v676
      %679 = vst [vmem:[#allocation2 + $0x2] sm:$0xf] %v677
      %v680 = vld [vmem:[#allocation2] sm:$0x3f]
      %v681 = vmul.bf16 %v680, %v281
      %v683 = vcombine.high %v681, %v681
      %v685 = vunpack.c.l.s4 1983009808
      %v686 = vunpack.c.0.s8 %v685
      %v687 = vlaneseq
      %v688 = vshrl.u32 %v687, 7
      %v689 = vsub.s32 %v686, %v688
      %v690 = vrot.slane %v681, %v689
      %v692 = vunpack.c.l.s4 1983009808
      %v693 = vunpack.c.0.s8 %v692
      %v694 = vlaneseq
      %v695 = vshrl.u32 %v694, 7
      %v696 = vsub.s32 %v693, %v695
      %v697 = vrot.slane %v683, %v696
      %698 = vrot.lane.b32.xlu0 %v690, 17
      %v699 = vpop.permute.xlu0 %698
      %700 = vrot.lane.b32.xlu0 %v697, 17
      %v701 = vpop.permute.xlu0 %700
      %v702 = vrot.slane %v699, 4
      %v703 = vrot.slane %v701, 4
      %v704 = vsel %vm306, %v702, %v703
      %v705 = vsel %vm308, %v699, %v704
      %707 = vst [vmem:[#allocation3] sm:$0x33] %v705
      %v708 = vld [vmem:[#allocation2] sm:$0x3f]
      %v710 = vcombine.low %v708, %v708
      %v712 = vunpack.c.l.s4 1983009808
      %v713 = vunpack.c.0.s8 %v712
      %v714 = vlaneseq
      %v715 = vshrl.u32 %v714, 7
      %v716 = vsub.s32 %v713, %v715
      %v717 = vrot.slane %v710, %v716
      %v719 = vunpack.c.l.s4 1983009808
      %v720 = vunpack.c.0.s8 %v719
      %v721 = vlaneseq
      %v722 = vshrl.u32 %v721, 7
      %v723 = vsub.s32 %v720, %v722
      %v724 = vrot.slane %v708, %v723
      %725 = vrot.lane.b32.xlu0 %v717, 16
      %v726 = vpop.permute.xlu0 %725
      %727 = vrot.lane.b32.xlu0 %v724, 16
      %v728 = vpop.permute.xlu0 %727
      %v729 = vrot.slane %v726, 4
      %v730 = vrot.slane %v728, 4
      %v731 = vsel %vm306, %v729, %v730
      %v732 = vsel %vm336, %v726, %v731
      %734 = vst [vmem:[#allocation3] sm:$0xcc] %v732
      %v735 = vld [vmem:[#allocation2] sm:$0x3f]
      %v736 = vmul.bf16 %v735, %v369
      %v738 = vcombine.high %v736, %v736
      %v740 = vunpack.c.l.s4 1983009808
      %v741 = vunpack.c.0.s8 %v740
      %v742 = vlaneseq
      %v743 = vshrl.u32 %v742, 7
      %v744 = vsub.s32 %v741, %v743
      %v745 = vrot.slane %v736, %v744
      %v747 = vunpack.c.l.s4 1983009808
      %v748 = vunpack.c.0.s8 %v747
      %v749 = vlaneseq
      %v750 = vshrl.u32 %v749, 7
      %v751 = vsub.s32 %v748, %v750
      %v752 = vrot.slane %v738, %v751
      %753 = vrot.lane.b32.xlu0 %v745, 15
      %v754 = vpop.permute.xlu0 %753
      %755 = vrot.lane.b32.xlu0 %v752, 15
      %v756 = vpop.permute.xlu0 %755
      %v757 = vrot.slane %v754, 4
      %v758 = vrot.slane %v756, 4
      %v759 = vsel %vm306, %v757, %v758
      %v760 = vsel %vm395, %v754, %v759
      %762 = vst [vmem:[#allocation3 + $0x8] sm:$0x33] %v760
      %v763 = vld [vmem:[#allocation2] sm:$0x3f]
      %v764 = vmul.bf16 %v763, %v404
      %v766 = vcombine.low %v764, %v764
      %v768 = vunpack.c.l.s4 1983009808
      %v769 = vunpack.c.0.s8 %v768
      %v770 = vlaneseq
      %v771 = vshrl.u32 %v770, 7
      %v772 = vsub.s32 %v769, %v771
      %v773 = vrot.slane %v766, %v772
      %v775 = vunpack.c.l.s4 1983009808
      %v776 = vunpack.c.0.s8 %v775
      %v777 = vlaneseq
      %v778 = vshrl.u32 %v777, 7
      %v779 = vsub.s32 %v776, %v778
      %v780 = vrot.slane %v764, %v779
      %781 = vrot.lane.b32.xlu0 %v773, 1
      %v782 = vpop.permute.xlu0 %781
      %783 = vrot.lane.b32.xlu0 %v780, 1
      %v784 = vpop.permute.xlu0 %783
      %v785 = vrot.slane %v782, 4
      %v786 = vrot.slane %v784, 4
      %v787 = vsel %vm306, %v785, %v786
      %v788 = vsel %vm430, %v782, %v787
      %790 = vst [vmem:[#allocation3 + $0x8] sm:$0xcc] %v788
      %v791 = vld [vmem:[#allocation2 + $0x2] sm:$0xf]
      %v794 = vunpack.c.l.s4 1983009808
      %v795 = vunpack.c.0.s8 %v794
      %v796 = vlaneseq
      %v797 = vshrl.u32 %v796, 7
      %v798 = vsub.s32 %v795, %v797
      %v799 = vrot.slane %v791, %v798
      %801 = vst [vmem:[#allocation3 + $0x10] sm:$0x33] %v799
      %v802 = vld [vmem:[#allocation2 + $0x2] sm:$0x3f]
      %v803 = vmul.bf16 %v802, %v449
      %v805 = vcombine.low %v803, %v803
      %v807 = vunpack.c.l.s4 1983009808
      %v808 = vunpack.c.0.s8 %v807
      %v809 = vlaneseq
      %v810 = vshrl.u32 %v809, 7
      %v811 = vsub.s32 %v808, %v810
      %v812 = vrot.slane %v805, %v811
      %v814 = vunpack.c.l.s4 1983009808
      %v815 = vunpack.c.0.s8 %v814
      %v816 = vlaneseq
      %v817 = vshrl.u32 %v816, 7
      %v818 = vsub.s32 %v815, %v817
      %v819 = vrot.slane %v803, %v818
      %820 = vrot.lane.b32.xlu0 %v812, 127
      %v821 = vpop.permute.xlu0 %820
      %822 = vrot.lane.b32.xlu0 %v819, 127
      %v823 = vpop.permute.xlu0 %822
      %v824 = vrot.slane %v821, 4
      %v825 = vrot.slane %v823, 4
      %v826 = vsel %vm306, %v824, %v825
      %v827 = vsel %vm403, %v821, %v826
      %829 = vst [vmem:[#allocation3 + $0x10] sm:$0xcc] %v827
      %v830 = vld [vmem:[#allocation2 + $0x2] sm:$0x3f]
      %v831 = vmul.bf16 %v830, %v482
      %v833 = vcombine.high %v831, %v831
      %v835 = vunpack.c.l.s4 1983009808
      %v836 = vunpack.c.0.s8 %v835
      %v837 = vlaneseq
      %v838 = vshrl.u32 %v837, 7
      %v839 = vsub.s32 %v836, %v838
      %v840 = vrot.slane %v831, %v839
      %v842 = vunpack.c.l.s4 1983009808
      %v843 = vunpack.c.0.s8 %v842
      %v844 = vlaneseq
      %v845 = vshrl.u32 %v844, 7
      %v846 = vsub.s32 %v843, %v845
      %v847 = vrot.slane %v833, %v846
      %848 = vrot.lane.b32.xlu0 %v840, 113
      %v849 = vpop.permute.xlu0 %848
      %850 = vrot.lane.b32.xlu0 %v847, 113
      %v851 = vpop.permute.xlu0 %850
      %v852 = vrot.slane %v849, 4
      %v853 = vrot.slane %v851, 4
      %v854 = vsel %vm306, %v852, %v853
      %v855 = vsel %vm368, %v849, %v854
      %857 = vst [vmem:[#allocation3 + $0x18] sm:$0x33] %v855
      %v858 = vld [vmem:[#allocation2 + $0x2] sm:$0x3f]
      %v860 = vcombine.low %v858, %v858
      %v862 = vunpack.c.l.s4 1983009808
      %v863 = vunpack.c.0.s8 %v862
      %v864 = vlaneseq
      %v865 = vshrl.u32 %v864, 7
      %v866 = vsub.s32 %v863, %v865
      %v867 = vrot.slane %v860, %v866
      %v869 = vunpack.c.l.s4 1983009808
      %v870 = vunpack.c.0.s8 %v869
      %v871 = vlaneseq
      %v872 = vshrl.u32 %v871, 7
      %v873 = vsub.s32 %v870, %v872
      %v874 = vrot.slane %v858, %v873
      %875 = vrot.lane.b32.xlu0 %v867, 112
      %v876 = vpop.permute.xlu0 %875
      %877 = vrot.lane.b32.xlu0 %v874, 112
      %v878 = vpop.permute.xlu0 %877
      %v879 = vrot.slane %v876, 4
      %v880 = vrot.slane %v878, 4
      %v881 = vsel %vm306, %v879, %v880
      %v882 = vsel %vm535, %v876, %v881
      %884 = vst [vmem:[#allocation3 + $0x18] sm:$0xcc] %v882
      %v885 = vld [vmem:[#allocation2 + $0x2] sm:$0x3f]
      %v886 = vmul.bf16 %v885, %v543
      %v888 = vcombine.high %v886, %v886
      %v890 = vunpack.c.l.s4 1983009808
      %v891 = vunpack.c.0.s8 %v890
      %v892 = vlaneseq
      %v893 = vshrl.u32 %v892, 7
      %v894 = vsub.s32 %v891, %v893
      %v895 = vrot.slane %v886, %v894
      %v897 = vunpack.c.l.s4 1983009808
      %v898 = vunpack.c.0.s8 %v897
      %v899 = vlaneseq
      %v900 = vshrl.u32 %v899, 7
      %v901 = vsub.s32 %v898, %v900
      %v902 = vrot.slane %v888, %v901
      %903 = vrot.lane.b32.xlu0 %v895, 111
      %v904 = vpop.permute.xlu0 %903
      %905 = vrot.lane.b32.xlu0 %v902, 111
      %v906 = vpop.permute.xlu0 %905
      %v907 = vrot.slane %v904, 4
      %v908 = vrot.slane %v906, 4
      %v909 = vsel %vm306, %v907, %v908
      %v910 = vsel %vm280, %v904, %v909
      %912 = vst [vmem:[#allocation3 + $0x20] sm:$0x33] %v910
      %v913 = vld [vmem:[#allocation3] sm:$0xff]
      %v914 = vld [vmem:[#allocation3 + $0x8] sm:$0xff]
      %v915 = vld [vmem:[#allocation3 + $0x10] sm:$0xff]
      %v916 = vld [vmem:[#allocation3 + $0x18] sm:$0xff]
      %v917 = vld [vmem:[#allocation3 + $0x20] sm:$0x33]
      %v923 = vunpack.c.l.b16 %v913
      %v924 = vunpack.c.h.b16 %v913
      %v925 = vunpack.c.l.b16 %v914
      %v926 = vunpack.c.h.b16 %v914
      %v927 = vunpack.c.l.b16 %v915
      %v928 = vunpack.c.h.b16 %v915
      %v929 = vunpack.c.l.b16 %v916
      %v930 = vunpack.c.h.b16 %v916
      %v931 = vunpack.c.l.b16 %v917
      %v932 = vunpack.c.h.b16 %v917
      %v933 = vpack.c.b16 %v925, %v923
      %v934 = vpack.c.b16 %v926, %v924
      %v935 = vpack.c.b16 %v929, %v927
      %v936 = vpack.c.b16 %v930, %v928
      %v937 = vpack.c.b16 %v931, %v931
      %v938 = vpack.c.b16 %v932, %v932
      %v944 = vsel %vm611, %v937, 0
      %v947 = vsel %vm611, %v938, 0
      %949 = vmatprep.subr.bf16.mxu0 %v934
      %950 = vmatpush1.bf16.msra.mxu0 %v933
      %951 = vmatprep.subr.bf16.mxu0 %v936
      %952 = vmatpush1.bf16.msra.mxu0 %v935
      %953 = vmatprep.subr.bf16.mxu0 %v947
      %954 = vmatpush1.bf16.msra.mxu0 %v944
      %955 = vmatprep.subr.bf16.mxu0 0
      %956 = vmatpush1.bf16.msra.mxu0 0
      %957 = vmatprep.subr.bf16.mxu0 0
      %958 = vmatpush1.bf16.msra.mxu0 0
      %959 = vmatprep.subr.bf16.mxu0 0
      %960 = vmatpush1.bf16.msra.mxu0 0
      %961 = vmatprep.subr.bf16.mxu0 0
      %962 = vmatpush1.bf16.msra.mxu0 0
      %963 = vmatprep.subr.bf16.mxu0 0
      %964 = vmatpush1.bf16.msra.mxu0 0
      %965 = vmatprep.subr.bf16.mxu0 0
      %966 = vmatpush1.bf16.msra.mxu0 0
      %967 = vmatprep.subr.bf16.mxu0 0
      %968 = vmatpush1.bf16.msra.mxu0 0
      %969 = vmatprep.subr.bf16.mxu0 0
      %970 = vmatpush1.bf16.msra.mxu0 0
      %971 = vmatprep.subr.bf16.mxu0 0
      %972 = vmatpush1.bf16.msra.mxu0 0
      %973 = vmatprep.subr.bf16.mxu0 0
      %974 = vmatpush1.bf16.msra.mxu0 0
      %975 = vmatprep.subr.bf16.mxu0 0
      %976 = vmatpush1.bf16.msra.mxu0 0
      %977 = vmatprep.subr.bf16.mxu0 0
      %978 = vmatpush1.bf16.msra.mxu0 0
      %979 = vmatprep.subr.bf16.mxu0 0
      %980 = vmatpush1.bf16.msra.mxu0 0
      %981 = vmatprep.mubr.bf16.mxu0 0
      %982 = vmatmul.mubr.bf16.gmra.mrb[0].mxu0 %v609
      %v983 = vpop.f32.mrb[0].mxu0
      %v984 = vadd.f32 %v580, %v983
      %v985 = vpop.f32.mrb[0].mxu0
      %v986 = vadd.f32 %v580, %v985
      %v987 = vpop.f32.mrb[0].mxu0
      %v988 = vpop.f32.mrb[0].mxu0
      %989 = vdwg.mxu0
      %s990 = scalar_lea.vmem %s204, 16
      %991 = vst [vmem:[%s990] sm:$0xff] %v984
      %992 = vst [vmem:[%s990 + $0x8] sm:$0xff] %v986
      %s993 = smul.u32 2, %s15
      %p994 = scmp.lt.s32.totalorder %s993, 3
      %s995 = scalar_select %p994, %s993, 3
      %s996 = smul.addr %s995, 2
      %s997 = smul.addr %s996, 8
      %s998 = scalar_lea.vmem %s4, %s997
      // Predicated region
      $region37: #{model_wraper_forward.2} parent=35 // pred_check
        %p999 = pneg %p122
      $region38: #{model_wraper_forward.2} parent=35 // pred_check_branch
        %1001 = sbr.rel (%p999) target = $region40
      $region39: #{model_wraper_forward.2} parent=35 // pred_region
        %s1002 = smul.u32 2, %s15
      $region40: #{model_wraper_forward.2} parent=35 // pred_fallthru
        _
    $region36: #{model_wraper_forward.2} parent=5 // pred_fallthru
      _
    %p1003 = scmp.le.s32.totalorder 2, %s10
    // Predicated region
    $region41: #{model_wraper_forward.2} parent=5 // pred_check
      %p1004 = pneg %p1003
    $region42: #{model_wraper_forward.2} parent=5 // pred_check_branch
      %1006 = sbr.rel (%p1004) target = $region44
    $region43: #{model_wraper_forward.2} parent=5 // pred_region
      %s1007 = ssub.s32 %s10, 2
      // Predicated region
      $region45: #{model_wraper_forward.2} parent=43 // pred_check
        %p1008 = pneg %p128
      $region46: #{model_wraper_forward.2} parent=43 // pred_check_branch
        %1010 = sbr.rel (%p1008) target = $region48
      $region47: #{model_wraper_forward.2} parent=43 // pred_region
        %s1011 = smul.u32 2, %s16
        %p1012 = scmp.lt.s32.totalorder %s1011, 3
        %s1013 = scalar_select %p1012, %s1011, 3
        %s1014 = smul.addr %s1013, 2
        %s1015 = smul.addr %s1014, 8
        %s1016 = scalar_lea.vmem %s4, %s1015
      $region48: #{model_wraper_forward.2} parent=43 // pred_fallthru
        _
    $region44: #{model_wraper_forward.2} parent=5 // pred_fallthru
      _
  $region6: #{model_wraper_forward.2} parent=0 // loop_footer
    %s14 = sadd.s32 1, %s10
  $region7: #{model_wraper_forward.2} parent=0 // loop_footer_branch
    %9 = sbr.rel target = $region3
  $region8: #{model_wraper_forward.2} parent=0 // loop_exit
    _

</llo_original>
